<compile_context>
chip_gen: v7x
topology: tpu7x:2x2x1
jax: 0.10.0
libtpu: 0.0.40
codegen_flags: <defaults>
</compile_context>

<pallas_src>
import functools
import math

import jax
import jax.numpy as jnp
from jax import lax
from jax.experimental import pallas as pl
from jax.experimental.pallas import tpu as pltpu


def _cross_attention_kernel(src_ref, tgt_ref, mask_ref,
                            wq_ref, wk_ref, wv_ref, wo_ref, bo_ref,
                            out_ref, q_sc, k_sc, v_sc, ctx_sc,
                            *, heads, head_dim, mask_heads):
    # Grid: (batch,). Per step:
    #   src_ref / tgt_ref : (1, L, E)
    #   mask_ref          : (1, Hm, L, L) int8, nonzero == masked (Hm in {1, H})
    #   wq/wk/wv/wo_ref   : (E, E)   pre-transposed weights (wq pre-scaled)
    #   bo_ref            : (1, E)
    #   out_ref           : (1, L, E)
    #   q/k/v/ctx scratch : (L, E) f32 VMEM
    src = src_ref[0]                                   # (L, E)
    tgt = tgt_ref[0]                                   # (L, E)
    mxu_dt = wq_ref.dtype                              # f32 or bf16 MXU operands

    # Fused, lane-dense projections: one (L,E)@(E,E) matmul each per batch
    # step.  The 1/sqrt(E) softmax scale is already folded into wq (host side).
    q_sc[...] = jnp.dot(src, wq_ref[...], preferred_element_type=jnp.float32)
    k_sc[...] = jnp.dot(tgt, wk_ref[...], preferred_element_type=jnp.float32)
    v_sc[...] = jnp.dot(tgt, wv_ref[...], preferred_element_type=jnp.float32)

    # Per-head attention, statically unrolled inside this single grid step
    # (no per-head grid overhead; the D-narrow contraction is inherent to MHA).
    for h in range(heads):
        cols = slice(h * head_dim, (h + 1) * head_dim)
        qh = q_sc[:, cols].astype(mxu_dt)              # (L, D)
        kh = k_sc[:, cols].astype(mxu_dt)              # (L, D)
        vh = v_sc[:, cols].astype(mxu_dt)              # (L, D)

        # q @ k.T expressed via contraction dims (no transpose materialization).
        energy = lax.dot_general(qh, kh, (((1,), (1,)), ((), ())),
                                 preferred_element_type=jnp.float32)   # (L, L)

        m = mask_ref[0, h] if mask_heads > 1 else mask_ref[0, 0]       # (L, L) i8
        energy = jnp.where(m != 0, -jnp.inf, energy)
        # A fully-masked row yields NaN, exactly like torch.masked_fill+softmax.

        energy = energy - jnp.max(energy, axis=-1, keepdims=True)
        p = jnp.exp(energy)
        p = p / jnp.sum(p, axis=-1, keepdims=True)     # exact divide, f32

        ctx_sc[:, cols] = jnp.dot(p.astype(mxu_dt), vh,
                                  preferred_element_type=jnp.float32)  # (L, D)

    # Lane-dense output projection over the full head-concatenated E dim.
    out = jnp.dot(ctx_sc[...].astype(mxu_dt), wo_ref[...],
                  preferred_element_type=jnp.float32)                  # (L, E)
    out_ref[0] = (out + bo_ref[...]).astype(out_ref.dtype)


def cross_attention_pallas(src, tgt, mask, params, heads, *, mxu_dtype=None):
    """src, tgt: (L, B, E); mask: (B, H, L, L) or (B, 1, L, L) bool (True == masked).

    mxu_dtype: optional narrower dtype (e.g. jnp.bfloat16) for MXU operands;
    softmax / masking / accumulation stay f32.
    """
    L, B, E = src.shape
    H = heads
    assert E % H == 0, "embed_dim must be divisible by heads"
    D = E // H

    wdt = jnp.dtype(mxu_dtype) if mxu_dtype is not None else jnp.dtype(jnp.float32)
    scale = 1.0 / math.sqrt(E)   # intentionally 1/sqrt(embed_dim): matches the module

    # One-time host-side layout work (hoisted out of the hot loop):
    #   - PyTorch (out, in) weights -> transposed; softmax scale folded into wq
    #   - mask narrowed to int8
    wqT = (params["wq"].T * scale).astype(wdt)          # (E, E)
    wkT = params["wk"].T.astype(wdt)                    # (E, E)
    wvT = params["wv"].T.astype(wdt)                    # (E, E)
    woT = params["wo"].T.astype(wdt)                    # (E, E)
    bo2 = params["bo"].reshape(1, E).astype(jnp.float32)

    mask_i8 = mask.astype(jnp.int8)                     # (B, Hm, L, L)
    Hm = mask_i8.shape[1]
    assert Hm in (1, H), "mask head dim must be 1 (broadcast) or heads"

    # Module interface is seq-first; kernel is batch-first.
    # TODO(synk): keep the surrounding model batch-first to drop these transposes.
    src_b = jnp.transpose(src, (1, 0, 2)).astype(wdt)   # (B, L, E)
    tgt_b = jnp.transpose(tgt, (1, 0, 2)).astype(wdt)   # (B, L, E)

    kernel = functools.partial(_cross_attention_kernel,
                               heads=H, head_dim=D, mask_heads=Hm)

    # Derive VMEM budget per generation (feedback: no hard-coded 64 MiB).
    try:
        cap = pltpu.get_tpu_info().vmem_capacity_bytes
        vmem_limit = int(max(cap - 16 * 1024 * 1024, 32 * 1024 * 1024))
    except Exception:
        vmem_limit = None

    out_b = pl.pallas_call(
        kernel,
        out_shape=jax.ShapeDtypeStruct((B, L, E), src.dtype),
        grid=(B,),
        in_specs=[
            pl.BlockSpec((1, L, E), lambda b: (b, 0, 0)),        # src
            pl.BlockSpec((1, L, E), lambda b: (b, 0, 0)),        # tgt
            pl.BlockSpec((1, Hm, L, L), lambda b: (b, 0, 0, 0)), # mask (int8)
            pl.BlockSpec((E, E), lambda b: (0, 0)),              # wq.T * scale (resident)
            pl.BlockSpec((E, E), lambda b: (0, 0)),              # wk.T
            pl.BlockSpec((E, E), lambda b: (0, 0)),              # wv.T
            pl.BlockSpec((E, E), lambda b: (0, 0)),              # wo.T
            pl.BlockSpec((1, E), lambda b: (0, 0)),              # bias
        ],
        out_specs=pl.BlockSpec((1, L, E), lambda b: (b, 0, 0)),
        scratch_shapes=[pltpu.VMEM((L, E), jnp.float32)] * 4,    # q, k, v, ctx
        compiler_params=pltpu.CompilerParams(
            dimension_semantics=("parallel",),
            vmem_limit_bytes=vmem_limit),
    )(src_b, tgt_b, mask_i8, wqT, wkT, wvT, woT, bo2)

    return jnp.transpose(out_b, (1, 0, 2))               # back to (L, B, E)


def cross_attention_ref(src, tgt, mask, params, heads):
    """Pure-JAX reference matching the PyTorch forward exactly."""
    wq, wk, wv, wo, bo = (params["wq"], params["wk"], params["wv"],
                          params["wo"], params["bo"])
    src_b = jnp.transpose(src, (1, 0, 2))
    tgt_b = jnp.transpose(tgt, (1, 0, 2))
    Q = src_b @ wq.T
    K = tgt_b @ wk.T
    V = tgt_b @ wv.T
    B, L, E = Q.shape
    D = E // heads
    Qh = Q.reshape(B, L, heads, D)
    Kh = K.reshape(B, L, heads, D)
    Vh = V.reshape(B, L, heads, D)
    energy = jnp.einsum("nqhd,nkhd->nhqk", Qh, Kh)
    energy = jnp.where(mask, -jnp.inf, energy)
    attn = jax.nn.softmax(energy / jnp.sqrt(jnp.float32(E)), axis=-1)
    out = jnp.einsum("nhql,nlhd->nqhd", attn, Vh).reshape(B, L, E)
    out = out @ wo.T + bo
    return jnp.transpose(out, (1, 0, 2))


def init_params(key, embed_dim):
    """Deterministic init; mimics nn.Linear's uniform(-1/sqrt(in), 1/sqrt(in))."""
    E = embed_dim
    bound = 1.0 / jnp.sqrt(jnp.float32(E))
    ks = jax.random.split(key, 5)
    return {
        "wq": jax.random.uniform(ks[0], (E, E), jnp.float32, -bound, bound),
        "wk": jax.random.uniform(ks[1], (E, E), jnp.float32, -bound, bound),
        "wv": jax.random.uniform(ks[2], (E, E), jnp.float32, -bound, bound),
        "wo": jax.random.uniform(ks[3], (E, E), jnp.float32, -bound, bound),
        "bo": jax.random.uniform(ks[4], (E,), jnp.float32, -bound, bound),
    }


if __name__ == "__main__":
    # Small shapes: seq L=8, batch B=2, embed E=32, heads H=4
    L, B, E, H = 8, 2, 32, 4

    key = jax.random.PRNGKey(0)
    k_src, k_tgt, k_mask, k_par = jax.random.split(key, 4)

    src = jax.random.normal(k_src, (L, B, E), jnp.float32)
    tgt = jax.random.normal(k_tgt, (L, B, E), jnp.float32)

    # Boolean mask (True == masked).  Keep the diagonal unmasked so no row is
    # fully masked (a fully-masked row is NaN in both PyTorch and this kernel).
    mask = jax.random.bernoulli(k_mask, 0.3, (B, H, L, L))
    eye = jnp.eye(L, dtype=bool)[None, None, :, :]
    mask = jnp.where(eye, False, mask)

    params = init_params(k_par, E)

    ref = cross_attention_ref(src, tgt, mask, params, H)

    # 1) f32 path (exact softmax divide, f32 MXU operands).
    out = jax.block_until_ready(cross_attention_pallas(src, tgt, mask, params, H))
    assert out.shape == (L, B, E)
    assert jnp.allclose(out, ref, atol=2e-3, rtol=2e-3), "f32 kernel mismatch vs reference"

    # 2) bf16 MXU-operand path (softmax / accumulation stay f32).
    out_bf = jax.block_until_ready(
        cross_attention_pallas(src, tgt, mask, params, H, mxu_dtype=jnp.bfloat16))
    assert out_bf.shape == (L, B, E)
    assert jnp.allclose(out_bf, ref, atol=8e-2, rtol=8e-2), "bf16 kernel mismatch vs reference"

    # 3) Head-invariant mask path: (B,1,L,L) stays resident-cheap (H x less mask DMA).
    mask_shared = mask[:, :1]                               # (B, 1, L, L)
    ref_shared = cross_attention_ref(src, tgt, mask_shared, params, H)
    out_shared = jax.block_until_ready(
        cross_attention_pallas(src, tgt, mask_shared, params, H))
    assert jnp.allclose(out_shared, ref_shared, atol=2e-3, rtol=2e-3), \
        "head-invariant-mask kernel mismatch vs reference"

    print("KERNEL_OK")
</pallas_src>

<mosaic_0001>
module attributes {stable_mosaic.version = 11 : i64} {
  func.func @_cross_attention_kernel(%arg0: i32, %arg1: memref<1x8x32xf32, #tpu.memory_space<vmem>>, %arg2: memref<1x8x32xf32, #tpu.memory_space<vmem>>, %arg3: memref<1x4x8x8xi8, #tpu.memory_space<vmem>>, %arg4: memref<32x32xf32, #tpu.memory_space<vmem>>, %arg5: memref<32x32xf32, #tpu.memory_space<vmem>>, %arg6: memref<32x32xf32, #tpu.memory_space<vmem>>, %arg7: memref<32x32xf32, #tpu.memory_space<vmem>>, %arg8: memref<1x32xf32, #tpu.memory_space<vmem>>, %arg9: memref<1x8x32xf32, #tpu.memory_space<vmem>>, %arg10: memref<8x32xf32, #tpu.memory_space<vmem>>, %arg11: memref<8x32xf32, #tpu.memory_space<vmem>>, %arg12: memref<8x32xf32, #tpu.memory_space<vmem>>, %arg13: memref<8x32xf32, #tpu.memory_space<vmem>>) attributes {dimension_semantics = [#tpu.dimension_semantics<parallel>], iteration_bounds = array<i64: 2>, scalar_prefetch = 0 : i64, scratch_operands = 4 : i64, tpu.core_type = #tpu.core_type<tc>, window_params = [{transform_indices = @transform_0, window_bounds = array<i64: 1, 8, 32>}, {transform_indices = @transform_1, window_bounds = array<i64: 1, 8, 32>}, {transform_indices = @transform_2, window_bounds = array<i64: 1, 4, 8, 8>}, {pipeline_mode = #tpu.pipeline_mode<synchronous>, transform_indices = @transform_3, window_bounds = array<i64: 32, 32>}, {pipeline_mode = #tpu.pipeline_mode<synchronous>, transform_indices = @transform_4, window_bounds = array<i64: 32, 32>}, {pipeline_mode = #tpu.pipeline_mode<synchronous>, transform_indices = @transform_5, window_bounds = array<i64: 32, 32>}, {pipeline_mode = #tpu.pipeline_mode<synchronous>, transform_indices = @transform_6, window_bounds = array<i64: 32, 32>}, {pipeline_mode = #tpu.pipeline_mode<synchronous>, transform_indices = @transform_7, window_bounds = array<i64: 1, 32>}, {transform_indices = @transform_8, window_bounds = array<i64: 1, 8, 32>}]} {
    %c0 = arith.constant 0 : index
    %c0_0 = arith.constant 0 : index
    %c0_1 = arith.constant 0 : index
    %0 = vector.load %arg1[%c0, %c0_0, %c0_1] : memref<1x8x32xf32, #tpu.memory_space<vmem>>, vector<1x8x32xf32>
    %1 = vector.shape_cast %0 : vector<1x8x32xf32> to vector<8x32xf32>
    %c0_2 = arith.constant 0 : index
    %c0_3 = arith.constant 0 : index
    %c0_4 = arith.constant 0 : index
    %2 = vector.load %arg2[%c0_2, %c0_3, %c0_4] : memref<1x8x32xf32, #tpu.memory_space<vmem>>, vector<1x8x32xf32>
    %3 = vector.shape_cast %2 : vector<1x8x32xf32> to vector<8x32xf32>
    %c0_5 = arith.constant 0 : index
    %c0_6 = arith.constant 0 : index
    %4 = vector.load %arg4[%c0_5, %c0_6] : memref<32x32xf32, #tpu.memory_space<vmem>>, vector<32x32xf32>
    %cst = arith.constant dense<0.000000e+00> : vector<8x32xf32>
    %5 = tpu.matmul %1, %4, %cst {dimension_numbers = #tpu.dot_dimension_numbers<[1], [0], [0], [1], [0, 0, 1, 1], [], []>} : vector<8x32xf32>, vector<32x32xf32>, vector<8x32xf32> -> vector<8x32xf32>
    %c0_7 = arith.constant 0 : index
    %c0_8 = arith.constant 0 : index
    %6 = vector.load %arg10[%c0_7, %c0_8] : memref<8x32xf32, #tpu.memory_space<vmem>>, vector<8x32xf32>
    tpu.vector_store %arg10[%c0_7, %c0_8], %5 {strides = array<i32>} : memref<8x32xf32, #tpu.memory_space<vmem>>, vector<8x32xf32>,
    %c0_9 = arith.constant 0 : index
    %c0_10 = arith.constant 0 : index
    %7 = vector.load %arg5[%c0_9, %c0_10] : memref<32x32xf32, #tpu.memory_space<vmem>>, vector<32x32xf32>
    %cst_11 = arith.constant dense<0.000000e+00> : vector<8x32xf32>
    %8 = tpu.matmul %3, %7, %cst_11 {dimension_numbers = #tpu.dot_dimension_numbers<[1], [0], [0], [1], [0, 0, 1, 1], [], []>} : vector<8x32xf32>, vector<32x32xf32>, vector<8x32xf32> -> vector<8x32xf32>
    %c0_12 = arith.constant 0 : index
    %c0_13 = arith.constant 0 : index
    %9 = vector.load %arg11[%c0_12, %c0_13] : memref<8x32xf32, #tpu.memory_space<vmem>>, vector<8x32xf32>
    tpu.vector_store %arg11[%c0_12, %c0_13], %8 {strides = array<i32>} : memref<8x32xf32, #tpu.memory_space<vmem>>, vector<8x32xf32>,
    %c0_14 = arith.constant 0 : index
    %c0_15 = arith.constant 0 : index
    %10 = vector.load %arg6[%c0_14, %c0_15] : memref<32x32xf32, #tpu.memory_space<vmem>>, vector<32x32xf32>
    %cst_16 = arith.constant dense<0.000000e+00> : vector<8x32xf32>
    %11 = tpu.matmul %3, %10, %cst_16 {dimension_numbers = #tpu.dot_dimension_numbers<[1], [0], [0], [1], [0, 0, 1, 1], [], []>} : vector<8x32xf32>, vector<32x32xf32>, vector<8x32xf32> -> vector<8x32xf32>
    %c0_17 = arith.constant 0 : index
    %c0_18 = arith.constant 0 : index
    %12 = vector.load %arg12[%c0_17, %c0_18] : memref<8x32xf32, #tpu.memory_space<vmem>>, vector<8x32xf32>
    tpu.vector_store %arg12[%c0_17, %c0_18], %11 {strides = array<i32>} : memref<8x32xf32, #tpu.memory_space<vmem>>, vector<8x32xf32>,
    %c0_19 = arith.constant 0 : index
    %c0_20 = arith.constant 0 : index
    %13 = vector.load %arg10[%c0_19, %c0_20] : memref<8x32xf32, #tpu.memory_space<vmem>>, vector<8x8xf32>
    %c0_21 = arith.constant 0 : index
    %c0_22 = arith.constant 0 : index
    %14 = vector.load %arg11[%c0_21, %c0_22] : memref<8x32xf32, #tpu.memory_space<vmem>>, vector<8x8xf32>
    %c0_23 = arith.constant 0 : index
    %c0_24 = arith.constant 0 : index
    %15 = vector.load %arg12[%c0_23, %c0_24] : memref<8x32xf32, #tpu.memory_space<vmem>>, vector<8x8xf32>
    %cst_25 = arith.constant dense<0.000000e+00> : vector<8x8xf32>
    %16 = tpu.matmul %13, %14, %cst_25 {dimension_numbers = #tpu.dot_dimension_numbers<[1], [1], [0], [0], [0, 0, 1, 0], [], []>} : vector<8x8xf32>, vector<8x8xf32>, vector<8x8xf32> -> vector<8x8xf32>
    %c0_26 = arith.constant 0 : index
    %c0_27 = arith.constant 0 : index
    %c0_28 = arith.constant 0 : index
    %c0_29 = arith.constant 0 : index
    %17 = vector.load %arg3[%c0_26, %c0_27, %c0_28, %c0_29] : memref<1x4x8x8xi8, #tpu.memory_space<vmem>>, vector<1x1x8x8xi8>
    %18 = vector.shape_cast %17 : vector<1x1x8x8xi8> to vector<8x8xi8>
    %c0_i8 = arith.constant 0 : i8
    %19 = vector.broadcast %c0_i8 : i8 to vector<8x8xi8>
    %20 = arith.cmpi ne, %18, %19 : vector<8x8xi8>
    %cst_30 = arith.constant 0xFF800000 : f32
    %21 = vector.broadcast %cst_30 : f32 to vector<8x8xf32>
    %22 = arith.select %20, %21, %16 : vector<8x8xi1>, vector<8x8xf32>
    %cst_31 = arith.constant dense<0xFF800000> : vector<8xf32>
    %23 = vector.multi_reduction <maximumf>, %22, %cst_31 [1] : vector<8x8xf32> to vector<8xf32>
    %24 = vector.shape_cast %23 : vector<8xf32> to vector<8x1xf32>
    %25 = vector.broadcast %24 : vector<8x1xf32> to vector<8x8xf32>
    %26 = arith.subf %22, %25 : vector<8x8xf32>
    %27 = math.exp %26 : vector<8x8xf32>
    %cst_32 = arith.constant dense<0.000000e+00> : vector<8xf32>
    %28 = vector.multi_reduction <add>, %27, %cst_32 [1] : vector<8x8xf32> to vector<8xf32>
    %29 = vector.shape_cast %28 : vector<8xf32> to vector<8x1xf32>
    %30 = vector.broadcast %29 : vector<8x1xf32> to vector<8x8xf32>
    %31 = arith.divf %27, %30 : vector<8x8xf32>
    %cst_33 = arith.constant dense<0.000000e+00> : vector<8x8xf32>
    %32 = tpu.matmul %31, %15, %cst_33 {dimension_numbers = #tpu.dot_dimension_numbers<[1], [0], [0], [1], [0, 0, 1, 1], [], []>} : vector<8x8xf32>, vector<8x8xf32>, vector<8x8xf32> -> vector<8x8xf32>
    %c0_34 = arith.constant 0 : index
    %c0_35 = arith.constant 0 : index
    %33 = vector.load %arg13[%c0_34, %c0_35] : memref<8x32xf32, #tpu.memory_space<vmem>>, vector<8x8xf32>
    tpu.vector_store %arg13[%c0_34, %c0_35], %32 {strides = array<i32>} : memref<8x32xf32, #tpu.memory_space<vmem>>, vector<8x8xf32>,
    %c0_36 = arith.constant 0 : index
    %c8 = arith.constant 8 : index
    %34 = vector.load %arg10[%c0_36, %c8] : memref<8x32xf32, #tpu.memory_space<vmem>>, vector<8x8xf32>
    %c0_37 = arith.constant 0 : index
    %c8_38 = arith.constant 8 : index
    %35 = vector.load %arg11[%c0_37, %c8_38] : memref<8x32xf32, #tpu.memory_space<vmem>>, vector<8x8xf32>
    %c0_39 = arith.constant 0 : index
    %c8_40 = arith.constant 8 : index
    %36 = vector.load %arg12[%c0_39, %c8_40] : memref<8x32xf32, #tpu.memory_space<vmem>>, vector<8x8xf32>
    %cst_41 = arith.constant dense<0.000000e+00> : vector<8x8xf32>
    %37 = tpu.matmul %34, %35, %cst_41 {dimension_numbers = #tpu.dot_dimension_numbers<[1], [1], [0], [0], [0, 0, 1, 0], [], []>} : vector<8x8xf32>, vector<8x8xf32>, vector<8x8xf32> -> vector<8x8xf32>
    %c0_42 = arith.constant 0 : index
    %c1 = arith.constant 1 : index
    %c0_43 = arith.constant 0 : index
    %c0_44 = arith.constant 0 : index
    %38 = vector.load %arg3[%c0_42, %c1, %c0_43, %c0_44] : memref<1x4x8x8xi8, #tpu.memory_space<vmem>>, vector<1x1x8x8xi8>
    %39 = vector.shape_cast %38 : vector<1x1x8x8xi8> to vector<8x8xi8>
    %c0_i8_45 = arith.constant 0 : i8
    %40 = vector.broadcast %c0_i8_45 : i8 to vector<8x8xi8>
    %41 = arith.cmpi ne, %39, %40 : vector<8x8xi8>
    %cst_46 = arith.constant 0xFF800000 : f32
    %42 = vector.broadcast %cst_46 : f32 to vector<8x8xf32>
    %43 = arith.select %41, %42, %37 : vector<8x8xi1>, vector<8x8xf32>
    %cst_47 = arith.constant dense<0xFF800000> : vector<8xf32>
    %44 = vector.multi_reduction <maximumf>, %43, %cst_47 [1] : vector<8x8xf32> to vector<8xf32>
    %45 = vector.shape_cast %44 : vector<8xf32> to vector<8x1xf32>
    %46 = vector.broadcast %45 : vector<8x1xf32> to vector<8x8xf32>
    %47 = arith.subf %43, %46 : vector<8x8xf32>
    %48 = math.exp %47 : vector<8x8xf32>
    %cst_48 = arith.constant dense<0.000000e+00> : vector<8xf32>
    %49 = vector.multi_reduction <add>, %48, %cst_48 [1] : vector<8x8xf32> to vector<8xf32>
    %50 = vector.shape_cast %49 : vector<8xf32> to vector<8x1xf32>
    %51 = vector.broadcast %50 : vector<8x1xf32> to vector<8x8xf32>
    %52 = arith.divf %48, %51 : vector<8x8xf32>
    %cst_49 = arith.constant dense<0.000000e+00> : vector<8x8xf32>
    %53 = tpu.matmul %52, %36, %cst_49 {dimension_numbers = #tpu.dot_dimension_numbers<[1], [0], [0], [1], [0, 0, 1, 1], [], []>} : vector<8x8xf32>, vector<8x8xf32>, vector<8x8xf32> -> vector<8x8xf32>
    %c0_50 = arith.constant 0 : index
    %c8_51 = arith.constant 8 : index
    %54 = vector.load %arg13[%c0_50, %c8_51] : memref<8x32xf32, #tpu.memory_space<vmem>>, vector<8x8xf32>
    tpu.vector_store %arg13[%c0_50, %c8_51], %53 {strides = array<i32>} : memref<8x32xf32, #tpu.memory_space<vmem>>, vector<8x8xf32>,
    %c0_52 = arith.constant 0 : index
    %c16 = arith.constant 16 : index
    %55 = vector.load %arg10[%c0_52, %c16] : memref<8x32xf32, #tpu.memory_space<vmem>>, vector<8x8xf32>
    %c0_53 = arith.constant 0 : index
    %c16_54 = arith.constant 16 : index
    %56 = vector.load %arg11[%c0_53, %c16_54] : memref<8x32xf32, #tpu.memory_space<vmem>>, vector<8x8xf32>
    %c0_55 = arith.constant 0 : index
    %c16_56 = arith.constant 16 : index
    %57 = vector.load %arg12[%c0_55, %c16_56] : memref<8x32xf32, #tpu.memory_space<vmem>>, vector<8x8xf32>
    %cst_57 = arith.constant dense<0.000000e+00> : vector<8x8xf32>
    %58 = tpu.matmul %55, %56, %cst_57 {dimension_numbers = #tpu.dot_dimension_numbers<[1], [1], [0], [0], [0, 0, 1, 0], [], []>} : vector<8x8xf32>, vector<8x8xf32>, vector<8x8xf32> -> vector<8x8xf32>
    %c0_58 = arith.constant 0 : index
    %c2 = arith.constant 2 : index
    %c0_59 = arith.constant 0 : index
    %c0_60 = arith.constant 0 : index
    %59 = vector.load %arg3[%c0_58, %c2, %c0_59, %c0_60] : memref<1x4x8x8xi8, #tpu.memory_space<vmem>>, vector<1x1x8x8xi8>
    %60 = vector.shape_cast %59 : vector<1x1x8x8xi8> to vector<8x8xi8>
    %c0_i8_61 = arith.constant 0 : i8
    %61 = vector.broadcast %c0_i8_61 : i8 to vector<8x8xi8>
    %62 = arith.cmpi ne, %60, %61 : vector<8x8xi8>
    %cst_62 = arith.constant 0xFF800000 : f32
    %63 = vector.broadcast %cst_62 : f32 to vector<8x8xf32>
    %64 = arith.select %62, %63, %58 : vector<8x8xi1>, vector<8x8xf32>
    %cst_63 = arith.constant dense<0xFF800000> : vector<8xf32>
    %65 = vector.multi_reduction <maximumf>, %64, %cst_63 [1] : vector<8x8xf32> to vector<8xf32>
    %66 = vector.shape_cast %65 : vector<8xf32> to vector<8x1xf32>
    %67 = vector.broadcast %66 : vector<8x1xf32> to vector<8x8xf32>
    %68 = arith.subf %64, %67 : vector<8x8xf32>
    %69 = math.exp %68 : vector<8x8xf32>
    %cst_64 = arith.constant dense<0.000000e+00> : vector<8xf32>
    %70 = vector.multi_reduction <add>, %69, %cst_64 [1] : vector<8x8xf32> to vector<8xf32>
    %71 = vector.shape_cast %70 : vector<8xf32> to vector<8x1xf32>
    %72 = vector.broadcast %71 : vector<8x1xf32> to vector<8x8xf32>
    %73 = arith.divf %69, %72 : vector<8x8xf32>
    %cst_65 = arith.constant dense<0.000000e+00> : vector<8x8xf32>
    %74 = tpu.matmul %73, %57, %cst_65 {dimension_numbers = #tpu.dot_dimension_numbers<[1], [0], [0], [1], [0, 0, 1, 1], [], []>} : vector<8x8xf32>, vector<8x8xf32>, vector<8x8xf32> -> vector<8x8xf32>
    %c0_66 = arith.constant 0 : index
    %c16_67 = arith.constant 16 : index
    %75 = vector.load %arg13[%c0_66, %c16_67] : memref<8x32xf32, #tpu.memory_space<vmem>>, vector<8x8xf32>
    tpu.vector_store %arg13[%c0_66, %c16_67], %74 {strides = array<i32>} : memref<8x32xf32, #tpu.memory_space<vmem>>, vector<8x8xf32>,
    %c0_68 = arith.constant 0 : index
    %c24 = arith.constant 24 : index
    %76 = vector.load %arg10[%c0_68, %c24] : memref<8x32xf32, #tpu.memory_space<vmem>>, vector<8x8xf32>
    %c0_69 = arith.constant 0 : index
    %c24_70 = arith.constant 24 : index
    %77 = vector.load %arg11[%c0_69, %c24_70] : memref<8x32xf32, #tpu.memory_space<vmem>>, vector<8x8xf32>
    %c0_71 = arith.constant 0 : index
    %c24_72 = arith.constant 24 : index
    %78 = vector.load %arg12[%c0_71, %c24_72] : memref<8x32xf32, #tpu.memory_space<vmem>>, vector<8x8xf32>
    %cst_73 = arith.constant dense<0.000000e+00> : vector<8x8xf32>
    %79 = tpu.matmul %76, %77, %cst_73 {dimension_numbers = #tpu.dot_dimension_numbers<[1], [1], [0], [0], [0, 0, 1, 0], [], []>} : vector<8x8xf32>, vector<8x8xf32>, vector<8x8xf32> -> vector<8x8xf32>
    %c0_74 = arith.constant 0 : index
    %c3 = arith.constant 3 : index
    %c0_75 = arith.constant 0 : index
    %c0_76 = arith.constant 0 : index
    %80 = vector.load %arg3[%c0_74, %c3, %c0_75, %c0_76] : memref<1x4x8x8xi8, #tpu.memory_space<vmem>>, vector<1x1x8x8xi8>
    %81 = vector.shape_cast %80 : vector<1x1x8x8xi8> to vector<8x8xi8>
    %c0_i8_77 = arith.constant 0 : i8
    %82 = vector.broadcast %c0_i8_77 : i8 to vector<8x8xi8>
    %83 = arith.cmpi ne, %81, %82 : vector<8x8xi8>
    %cst_78 = arith.constant 0xFF800000 : f32
    %84 = vector.broadcast %cst_78 : f32 to vector<8x8xf32>
    %85 = arith.select %83, %84, %79 : vector<8x8xi1>, vector<8x8xf32>
    %cst_79 = arith.constant dense<0xFF800000> : vector<8xf32>
    %86 = vector.multi_reduction <maximumf>, %85, %cst_79 [1] : vector<8x8xf32> to vector<8xf32>
    %87 = vector.shape_cast %86 : vector<8xf32> to vector<8x1xf32>
    %88 = vector.broadcast %87 : vector<8x1xf32> to vector<8x8xf32>
    %89 = arith.subf %85, %88 : vector<8x8xf32>
    %90 = math.exp %89 : vector<8x8xf32>
    %cst_80 = arith.constant dense<0.000000e+00> : vector<8xf32>
    %91 = vector.multi_reduction <add>, %90, %cst_80 [1] : vector<8x8xf32> to vector<8xf32>
    %92 = vector.shape_cast %91 : vector<8xf32> to vector<8x1xf32>
    %93 = vector.broadcast %92 : vector<8x1xf32> to vector<8x8xf32>
    %94 = arith.divf %90, %93 : vector<8x8xf32>
    %cst_81 = arith.constant dense<0.000000e+00> : vector<8x8xf32>
    %95 = tpu.matmul %94, %78, %cst_81 {dimension_numbers = #tpu.dot_dimension_numbers<[1], [0], [0], [1], [0, 0, 1, 1], [], []>} : vector<8x8xf32>, vector<8x8xf32>, vector<8x8xf32> -> vector<8x8xf32>
    %c0_82 = arith.constant 0 : index
    %c24_83 = arith.constant 24 : index
    %96 = vector.load %arg13[%c0_82, %c24_83] : memref<8x32xf32, #tpu.memory_space<vmem>>, vector<8x8xf32>
    tpu.vector_store %arg13[%c0_82, %c24_83], %95 {strides = array<i32>} : memref<8x32xf32, #tpu.memory_space<vmem>>, vector<8x8xf32>,
    %c0_84 = arith.constant 0 : index
    %c0_85 = arith.constant 0 : index
    %97 = vector.load %arg13[%c0_84, %c0_85] : memref<8x32xf32, #tpu.memory_space<vmem>>, vector<8x32xf32>
    %c0_86 = arith.constant 0 : index
    %c0_87 = arith.constant 0 : index
    %98 = vector.load %arg7[%c0_86, %c0_87] : memref<32x32xf32, #tpu.memory_space<vmem>>, vector<32x32xf32>
    %cst_88 = arith.constant dense<0.000000e+00> : vector<8x32xf32>
    %99 = tpu.matmul %97, %98, %cst_88 {dimension_numbers = #tpu.dot_dimension_numbers<[1], [0], [0], [1], [0, 0, 1, 1], [], []>} : vector<8x32xf32>, vector<32x32xf32>, vector<8x32xf32> -> vector<8x32xf32>
    %c0_89 = arith.constant 0 : index
    %c0_90 = arith.constant 0 : index
    %100 = vector.load %arg8[%c0_89, %c0_90] : memref<1x32xf32, #tpu.memory_space<vmem>>, vector<1x32xf32>
    %101 = vector.broadcast %100 : vector<1x32xf32> to vector<8x32xf32>
    %102 = arith.addf %99, %101 : vector<8x32xf32>
    %c0_91 = arith.constant 0 : index
    %c0_92 = arith.constant 0 : index
    %c0_93 = arith.constant 0 : index
    %103 = vector.load %arg9[%c0_91, %c0_92, %c0_93] : memref<1x8x32xf32, #tpu.memory_space<vmem>>, vector<1x8x32xf32>
    %104 = vector.shape_cast %103 : vector<1x8x32xf32> to vector<8x32xf32>
    %105 = vector.shape_cast %102 : vector<8x32xf32> to vector<1x8x32xf32>
    tpu.vector_store %arg9[%c0_91, %c0_92, %c0_93], %105 {strides = array<i32>} : memref<1x8x32xf32, #tpu.memory_space<vmem>>, vector<1x8x32xf32>,
    return
  }
  func.func @transform_0(%arg0: i32) -> (i32, i32, i32) {
    %c0_i32 = arith.constant 0 : i32
    %c0_i32_0 = arith.constant 0 : i32
    %c0_i32_1 = arith.constant 0 : i32
    return %arg0, %c0_i32, %c0_i32_0 : i32, i32, i32
  }
  func.func @transform_1(%arg0: i32) -> (i32, i32, i32) {
    %c0_i32 = arith.constant 0 : i32
    %c0_i32_0 = arith.constant 0 : i32
    %c0_i32_1 = arith.constant 0 : i32
    return %arg0, %c0_i32, %c0_i32_0 : i32, i32, i32
  }
  func.func @transform_2(%arg0: i32) -> (i32, i32, i32, i32) {
    %c0_i32 = arith.constant 0 : i32
    %c0_i32_0 = arith.constant 0 : i32
    %c0_i32_1 = arith.constant 0 : i32
    %c0_i32_2 = arith.constant 0 : i32
    return %arg0, %c0_i32, %c0_i32_0, %c0_i32_1 : i32, i32, i32, i32
  }
  func.func @transform_3(%arg0: i32) -> (i32, i32) {
    %c0_i32 = arith.constant 0 : i32
    %c0_i32_0 = arith.constant 0 : i32
    %c0_i32_1 = arith.constant 0 : i32
    return %c0_i32, %c0_i32_0 : i32, i32
  }
  func.func @transform_4(%arg0: i32) -> (i32, i32) {
    %c0_i32 = arith.constant 0 : i32
    %c0_i32_0 = arith.constant 0 : i32
    %c0_i32_1 = arith.constant 0 : i32
    return %c0_i32, %c0_i32_0 : i32, i32
  }
  func.func @transform_5(%arg0: i32) -> (i32, i32) {
    %c0_i32 = arith.constant 0 : i32
    %c0_i32_0 = arith.constant 0 : i32
    %c0_i32_1 = arith.constant 0 : i32
    return %c0_i32, %c0_i32_0 : i32, i32
  }
  func.func @transform_6(%arg0: i32) -> (i32, i32) {
    %c0_i32 = arith.constant 0 : i32
    %c0_i32_0 = arith.constant 0 : i32
    %c0_i32_1 = arith.constant 0 : i32
    return %c0_i32, %c0_i32_0 : i32, i32
  }
  func.func @transform_7(%arg0: i32) -> (i32, i32) {
    %c0_i32 = arith.constant 0 : i32
    %c0_i32_0 = arith.constant 0 : i32
    %c0_i32_1 = arith.constant 0 : i32
    return %c0_i32, %c0_i32_0 : i32, i32
  }
  func.func @transform_8(%arg0: i32) -> (i32, i32, i32) {
    %c0_i32 = arith.constant 0 : i32
    %c0_i32_0 = arith.constant 0 : i32
    %c0_i32_1 = arith.constant 0 : i32
    return %arg0, %c0_i32, %c0_i32_0 : i32, i32, i32
  }
}

</mosaic_0001>

<llo_original>
// kernel: tpu_custom_call.1
$region0: #{tpu_custom_call.1}
  #allocation0 [shape = 'u32[]', space=smem, size = 0x4, offset = 0x4, fixed_abs, tag = 'smem constant byte address 0x4 - core index']
  #allocation1 [shape = 'u32[144,128]{1,0:T(1,128)}', space=vmem, size = 0x12000, scoped, tag = 'internal scratch']
  #allocation2 [shape = 'f32[8,32]{1,0:T(8,128)}', space=vmem, size = 0x1000, scoped, tag = 'scratch operand']
  #allocation3 [shape = 'f32[8,32]{1,0:T(8,128)}', space=vmem, size = 0x1000, scoped, tag = 'scratch operand']
  #allocation4 [shape = 'f32[8,32]{1,0:T(8,128)}', space=vmem, size = 0x1000, scoped, tag = 'scratch operand']
  #allocation5 [shape = 'f32[8,32]{1,0:T(8,128)}', space=vmem, size = 0x1000, scoped, tag = 'scratch operand']
  %s0 = inlined_call_operand.hbm [shape: f32[2,8,32], index: 0, kind: input, shape index: {}]
  %s1 = inlined_call_operand.hbm [shape: f32[2,8,32], index: 1, kind: input, shape index: {}]
  %s2 = inlined_call_operand.hbm [shape: s8[2,4,8,8], index: 2, kind: input, shape index: {}]
  %s3 = inlined_call_operand.hbm [shape: f32[32,32], index: 3, kind: input, shape index: {}]
  %s4 = inlined_call_operand.hbm [shape: f32[32,32], index: 4, kind: input, shape index: {}]
  %s5 = inlined_call_operand.hbm [shape: f32[32,32], index: 5, kind: input, shape index: {}]
  %s6 = inlined_call_operand.hbm [shape: f32[32,32], index: 6, kind: input, shape index: {}]
  %s7 = inlined_call_operand.vmem [shape: f32[1,32], index: 7, kind: input, shape index: {}]
  %s8 = inlined_call_operand.hbm [shape: f32[2,8,32], index: 8, kind: output, shape index: {}]
  %s9 = sld [smem:[#allocation0]]
  $region93: #{tpu_custom_call.1} parent=0
    _
  %s11 = ssub.s32 1, %s9
  %s12 = scalar_select 0, %s11, %s9
  $region1: #{tpu_custom_call.1} parent=0
    #allocation6 [shape = 'u8[8192]{0}', space=vmem, size = 0x2000, scoped, tag = 'input window, operand 0']
    #allocation7 [shape = 's32[2]{0}', space=sflag, size = 0x8, scoped, tag = 'scoped memory for tpu_custom_call.1']
    #allocation8 [shape = 's32[2]{0}', space=sflag, size = 0x8, scoped, tag = 'scoped memory for tpu_custom_call.1']
    #allocation9 [shape = 'u8[8192]{0}', space=vmem, size = 0x2000, scoped, tag = 'input window, operand 1']
    #allocation10 [shape = 's32[2]{0}', space=sflag, size = 0x8, scoped, tag = 'scoped memory for tpu_custom_call.1']
    #allocation11 [shape = 'u8[8192]{0}', space=vmem, size = 0x2000, scoped, tag = 'input window, operand 2']
    #allocation12 [shape = 'u8[16384]{0}', space=vmem, size = 0x4000, scoped, tag = 'input window, operand 3, single buffered']
    #allocation13 [shape = 's32[1]{0}', space=sflag, size = 0x4, scoped, tag = 'scoped memory for tpu_custom_call.1']
    #allocation14 [shape = 'u8[16384]{0}', space=vmem, size = 0x4000, scoped, tag = 'input window, operand 4, single buffered']
    #allocation15 [shape = 'u8[16384]{0}', space=vmem, size = 0x4000, scoped, tag = 'input window, operand 5, single buffered']
    #allocation16 [shape = 's32[1]{0}', space=sflag, size = 0x4, scoped, tag = 'scoped memory for tpu_custom_call.1']
    #allocation17 [shape = 'u8[16384]{0}', space=vmem, size = 0x4000, scoped, tag = 'input window, operand 6, single buffered']
    #allocation18 [shape = 'u8[8192]{0}', space=vmem, size = 0x2000, scoped, tag = 'output window, operand 0']
    %13 = vsyncpa [#allocation7], 0
    %s14 = scalar_lea.sflag [#allocation7], 1
    %15 = vsyncpa %s14, 0
    %16 = vsyncpa [#allocation10], 0
    %s17 = scalar_lea.sflag [#allocation10], 1
    %18 = vsyncpa %s17, 0
    %19 = vsyncpa [#allocation13], 0
    %20 = vsyncpa [#allocation16], 0
    %21 = vsyncpa [#allocation8], 0
    %s22 = scalar_lea.sflag [#allocation8], 1
    %23 = vsyncpa %s22, 0
    loop: start=0, step=1, limit=4
    $region2: #{tpu_custom_call.1} parent=1 // loop_pre_header
      _
    $region3: #{tpu_custom_call.1} parent=1 // loop_header
      %s25 = sphi 0, %s29
      %p26 = scmp.ge.s32.totalorder %s25, 4
      %s35 = sphi 0, %s37
      %s38 = sphi 0, %s35
      %s39 = sphi 0, %s38
      %s55 = sphi 0, %s39
      %s61 = sphi 0, %s63
      %s64 = sphi 0, %s61
      %s65 = sphi 0, %s64
      %s81 = sphi 0, %s65
      %s87 = sphi 0, %s89
      %s90 = sphi 0, %s87
      %s91 = sphi 0, %s90
      %s107 = sphi 0, %s91
      %s111 = sphi 0, %s111
      %s113 = sphi 0, %s111
      %s114 = sphi 0, %s113
      %s128 = sphi 0, %s114
      %s132 = sphi 0, %s132
      %s134 = sphi 0, %s132
      %s135 = sphi 0, %s134
      %s149 = sphi 0, %s135
      %s153 = sphi 0, %s153
      %s155 = sphi 0, %s153
      %s156 = sphi 0, %s155
      %s170 = sphi 0, %s156
      %s174 = sphi 0, %s174
      %s176 = sphi 0, %s174
      %s177 = sphi 0, %s176
      %s191 = sphi 0, %s177
      %s195 = sphi 0, %s195
      %s197 = sphi 0, %s195
      %s198 = sphi 0, %s197
      %s212 = sphi 0, %s198
      %s218 = sphi 0, %s220
      %s221 = sphi 0, %s218
      %s222 = sphi 0, %s221
      %s238 = sphi 0, %s222
    $region4: #{tpu_custom_call.1} parent=1 // loop_header_branch
      %28 = sbr.rel (%p26) target = $region8
    $region5: #{tpu_custom_call.1} parent=1 // loop_body
      %s30 = ssub.s32 %s25, 1
      %s31 = ssub.s32 %s25, 2
      %s32 = sadd.s32 %s25, 1
      %s33 = ssub.s32 %s25, %s32
      %p34 = scmp.eq.s32.totalorder %s33, 0
      %s36 = sadd.s32 %s35, 1
      %s37 = scalar_select %p34, %s35, %s36
      %p40 = pneg %p34
      %p41 = scmp.eq.s32.totalorder %s25, 1
      %p42 = por %p40, %p41
      %p43 = scmp.ne.s32.totalorder %s35, %s38
      %p44 = scmp.eq.s32.totalorder %s25, 0
      %p45 = por %p43, %p44
      %p46 = scmp.ne.s32.totalorder %s35, %s38
      %p47 = scmp.eq.s32.totalorder %s30, 1
      %p48 = por %p46, %p47
      %p49 = scmp.ne.s32.totalorder %s38, %s39
      %p50 = scmp.eq.s32.totalorder %s30, 0
      %p51 = por %p49, %p50
      %p52 = scmp.ne.s32.totalorder %s38, %s39
      %p53 = scmp.eq.s32.totalorder %s31, 1
      %p54 = por %p52, %p53
      %p56 = scmp.ne.s32.totalorder %s39, %s55
      %p57 = scmp.eq.s32.totalorder %s31, 0
      %p58 = por %p56, %p57
      %s59 = ssub.s32 %s25, %s32
      %p60 = scmp.eq.s32.totalorder %s59, 0
      %s62 = sadd.s32 %s61, 1
      %s63 = scalar_select %p60, %s61, %s62
      %p66 = pneg %p60
      %p67 = scmp.eq.s32.totalorder %s25, 1
      %p68 = por %p66, %p67
      %p69 = scmp.ne.s32.totalorder %s61, %s64
      %p70 = scmp.eq.s32.totalorder %s25, 0
      %p71 = por %p69, %p70
      %p72 = scmp.ne.s32.totalorder %s61, %s64
      %p73 = scmp.eq.s32.totalorder %s30, 1
      %p74 = por %p72, %p73
      %p75 = scmp.ne.s32.totalorder %s64, %s65
      %p76 = scmp.eq.s32.totalorder %s30, 0
      %p77 = por %p75, %p76
      %p78 = scmp.ne.s32.totalorder %s64, %s65
      %p79 = scmp.eq.s32.totalorder %s31, 1
      %p80 = por %p78, %p79
      %p82 = scmp.ne.s32.totalorder %s65, %s81
      %p83 = scmp.eq.s32.totalorder %s31, 0
      %p84 = por %p82, %p83
      %s85 = ssub.s32 %s25, %s32
      %p86 = scmp.eq.s32.totalorder %s85, 0
      %s88 = sadd.s32 %s87, 1
      %s89 = scalar_select %p86, %s87, %s88
      %p92 = pneg %p86
      %p93 = scmp.eq.s32.totalorder %s25, 1
      %p94 = por %p92, %p93
      %p95 = scmp.ne.s32.totalorder %s87, %s90
      %p96 = scmp.eq.s32.totalorder %s25, 0
      %p97 = por %p95, %p96
      %p98 = scmp.ne.s32.totalorder %s87, %s90
      %p99 = scmp.eq.s32.totalorder %s30, 1
      %p100 = por %p98, %p99
      %p101 = scmp.ne.s32.totalorder %s90, %s91
      %p102 = scmp.eq.s32.totalorder %s30, 0
      %p103 = por %p101, %p102
      %p104 = scmp.ne.s32.totalorder %s90, %s91
      %p105 = scmp.eq.s32.totalorder %s31, 1
      %p106 = por %p104, %p105
      %p108 = scmp.ne.s32.totalorder %s91, %s107
      %p109 = scmp.eq.s32.totalorder %s31, 0
      %p110 = por %p108, %p109
      %s112 = sadd.s32 %s111, 1
      %p115 = scmp.eq.s32.totalorder %s25, 1
      %p116 = scmp.ne.s32.totalorder %s111, %s113
      %p117 = scmp.eq.s32.totalorder %s25, 0
      %p118 = por %p116, %p117
      %p119 = scmp.ne.s32.totalorder %s111, %s113
      %p120 = scmp.eq.s32.totalorder %s30, 1
      %p121 = por %p119, %p120
      %p122 = scmp.ne.s32.totalorder %s113, %s114
      %p123 = scmp.eq.s32.totalorder %s30, 0
      %p124 = por %p122, %p123
      %p125 = scmp.ne.s32.totalorder %s113, %s114
      %p126 = scmp.eq.s32.totalorder %s31, 1
      %p127 = por %p125, %p126
      %p129 = scmp.ne.s32.totalorder %s114, %s128
      %p130 = scmp.eq.s32.totalorder %s31, 0
      %p131 = por %p129, %p130
      %s133 = sadd.s32 %s132, 1
      %p136 = scmp.eq.s32.totalorder %s25, 1
      %p137 = scmp.ne.s32.totalorder %s132, %s134
      %p138 = scmp.eq.s32.totalorder %s25, 0
      %p139 = por %p137, %p138
      %p140 = scmp.ne.s32.totalorder %s132, %s134
      %p141 = scmp.eq.s32.totalorder %s30, 1
      %p142 = por %p140, %p141
      %p143 = scmp.ne.s32.totalorder %s134, %s135
      %p144 = scmp.eq.s32.totalorder %s30, 0
      %p145 = por %p143, %p144
      %p146 = scmp.ne.s32.totalorder %s134, %s135
      %p147 = scmp.eq.s32.totalorder %s31, 1
      %p148 = por %p146, %p147
      %p150 = scmp.ne.s32.totalorder %s135, %s149
      %p151 = scmp.eq.s32.totalorder %s31, 0
      %p152 = por %p150, %p151
      %s154 = sadd.s32 %s153, 1
      %p157 = scmp.eq.s32.totalorder %s25, 1
      %p158 = scmp.ne.s32.totalorder %s153, %s155
      %p159 = scmp.eq.s32.totalorder %s25, 0
      %p160 = por %p158, %p159
      %p161 = scmp.ne.s32.totalorder %s153, %s155
      %p162 = scmp.eq.s32.totalorder %s30, 1
      %p163 = por %p161, %p162
      %p164 = scmp.ne.s32.totalorder %s155, %s156
      %p165 = scmp.eq.s32.totalorder %s30, 0
      %p166 = por %p164, %p165
      %p167 = scmp.ne.s32.totalorder %s155, %s156
      %p168 = scmp.eq.s32.totalorder %s31, 1
      %p169 = por %p167, %p168
      %p171 = scmp.ne.s32.totalorder %s156, %s170
      %p172 = scmp.eq.s32.totalorder %s31, 0
      %p173 = por %p171, %p172
      %s175 = sadd.s32 %s174, 1
      %p178 = scmp.eq.s32.totalorder %s25, 1
      %p179 = scmp.ne.s32.totalorder %s174, %s176
      %p180 = scmp.eq.s32.totalorder %s25, 0
      %p181 = por %p179, %p180
      %p182 = scmp.ne.s32.totalorder %s174, %s176
      %p183 = scmp.eq.s32.totalorder %s30, 1
      %p184 = por %p182, %p183
      %p185 = scmp.ne.s32.totalorder %s176, %s177
      %p186 = scmp.eq.s32.totalorder %s30, 0
      %p187 = por %p185, %p186
      %p188 = scmp.ne.s32.totalorder %s176, %s177
      %p189 = scmp.eq.s32.totalorder %s31, 1
      %p190 = por %p188, %p189
      %p192 = scmp.ne.s32.totalorder %s177, %s191
      %p193 = scmp.eq.s32.totalorder %s31, 0
      %p194 = por %p192, %p193
      %s196 = sadd.s32 %s195, 1
      %p199 = scmp.eq.s32.totalorder %s25, 1
      %p200 = scmp.ne.s32.totalorder %s195, %s197
      %p201 = scmp.eq.s32.totalorder %s25, 0
      %p202 = por %p200, %p201
      %p203 = scmp.ne.s32.totalorder %s195, %s197
      %p204 = scmp.eq.s32.totalorder %s30, 1
      %p205 = por %p203, %p204
      %p206 = scmp.ne.s32.totalorder %s197, %s198
      %p207 = scmp.eq.s32.totalorder %s30, 0
      %p208 = por %p206, %p207
      %p209 = scmp.ne.s32.totalorder %s197, %s198
      %p210 = scmp.eq.s32.totalorder %s31, 1
      %p211 = por %p209, %p210
      %p213 = scmp.ne.s32.totalorder %s198, %s212
      %p214 = scmp.eq.s32.totalorder %s31, 0
      %p215 = por %p213, %p214
      %s216 = ssub.s32 %s25, %s32
      %p217 = scmp.eq.s32.totalorder %s216, 0
      %s219 = sadd.s32 %s218, 1
      %s220 = scalar_select %p217, %s218, %s219
      %p223 = pneg %p217
      %p224 = scmp.eq.s32.totalorder %s25, 1
      %p225 = por %p223, %p224
      %p226 = scmp.ne.s32.totalorder %s218, %s221
      %p227 = scmp.eq.s32.totalorder %s25, 0
      %p228 = por %p226, %p227
      %p229 = scmp.ne.s32.totalorder %s218, %s221
      %p230 = scmp.eq.s32.totalorder %s30, 1
      %p231 = por %p229, %p230
      %p232 = scmp.ne.s32.totalorder %s221, %s222
      %p233 = scmp.eq.s32.totalorder %s30, 0
      %p234 = por %p232, %p233
      %p235 = scmp.ne.s32.totalorder %s221, %s222
      %p236 = scmp.eq.s32.totalorder %s31, 1
      %p237 = por %p235, %p236
      %p239 = scmp.ne.s32.totalorder %s222, %s238
      %p240 = scmp.eq.s32.totalorder %s31, 0
      %p241 = por %p239, %p240
      %p242 = scmp.le.s32.totalorder 1, %s25
      %p243 = scmp.lt.s32.totalorder %s25, 3
      %p244 = pnand %p242, %p243
      %p245 = pneg %p244
      // Predicated region
      $region9: #{tpu_custom_call.1} parent=5 // pred_check
        _
      $region10: #{tpu_custom_call.1} parent=5 // pred_check_branch
        %247 = sbr.rel (%p244) target = $region12
      $region11: #{tpu_custom_call.1} parent=5 // pred_region
        %s248 = ssub.s32 %s25, 1
        // Predicated region
        $region13: #{tpu_custom_call.1} parent=11 // pred_check
          %p249 = pneg %p124
        $region14: #{tpu_custom_call.1} parent=11 // pred_check_branch
          %251 = sbr.rel (%p249) target = $region16
        $region15: #{tpu_custom_call.1} parent=11 // pred_region
          %s253 = ssub.s32 512, 512
          %254 = vsyncadd [#allocation13], %s253
          %s255 = sshll.u32 [#allocation12], 4
          %s256 = int_to_ptr.vmem [resolvable:$true] %s255
          %261 = dma.hbm_to_vmem [thread:$0]  %s3, 512, %s256, [#allocation13], 128, 128, 8
        $region16: #{tpu_custom_call.1} parent=11 // pred_fallthru
          _
        // Predicated region
        $region17: #{tpu_custom_call.1} parent=11 // pred_check
          %p262 = pneg %p145
        $region18: #{tpu_custom_call.1} parent=11 // pred_check_branch
          %264 = sbr.rel (%p262) target = $region20
        $region19: #{tpu_custom_call.1} parent=11 // pred_region
          %s266 = ssub.s32 512, 512
          %267 = vsyncadd [#allocation13], %s266
          %s268 = sshll.u32 [#allocation14], 4
          %s269 = int_to_ptr.vmem [resolvable:$true] %s268
          %274 = dma.hbm_to_vmem [thread:$0]  %s4, 512, %s269, [#allocation13], 128, 128, 8
        $region20: #{tpu_custom_call.1} parent=11 // pred_fallthru
          _
        // Predicated region
        $region21: #{tpu_custom_call.1} parent=11 // pred_check
          %p275 = pneg %p166
        $region22: #{tpu_custom_call.1} parent=11 // pred_check_branch
          %277 = sbr.rel (%p275) target = $region24
        $region23: #{tpu_custom_call.1} parent=11 // pred_region
          %s279 = ssub.s32 512, 512
          %280 = vsyncadd [#allocation16], %s279
          %s281 = sshll.u32 [#allocation15], 4
          %s282 = int_to_ptr.vmem [resolvable:$true] %s281
          %287 = dma.hbm_to_vmem [thread:$0]  %s5, 512, %s282, [#allocation16], 128, 128, 8
        $region24: #{tpu_custom_call.1} parent=11 // pred_fallthru
          _
        // Predicated region
        $region25: #{tpu_custom_call.1} parent=11 // pred_check
          %p288 = pneg %p187
        $region26: #{tpu_custom_call.1} parent=11 // pred_check_branch
          %290 = sbr.rel (%p288) target = $region28
        $region27: #{tpu_custom_call.1} parent=11 // pred_region
          %s292 = ssub.s32 512, 512
          %293 = vsyncadd [#allocation16], %s292
          %s294 = sshll.u32 [#allocation17], 4
          %s295 = int_to_ptr.vmem [resolvable:$true] %s294
          %300 = dma.hbm_to_vmem [thread:$0]  %s6, 512, %s295, [#allocation16], 128, 128, 8
        $region28: #{tpu_custom_call.1} parent=11 // pred_fallthru
          _
        // Predicated region
        $region29: #{tpu_custom_call.1} parent=11 // pred_check
          %p301 = pneg %p208
        $region30: #{tpu_custom_call.1} parent=11 // pred_check_branch
          %303 = sbr.rel (%p301) target = $region32
        $region31: #{tpu_custom_call.1} parent=11 // pred_region
          _
        $region32: #{tpu_custom_call.1} parent=11 // pred_fallthru
          _
      $region12: #{tpu_custom_call.1} parent=5 // pred_fallthru
        _
      %p304 = scmp.lt.s32.totalorder %s25, 2
      // Predicated region
      $region33: #{tpu_custom_call.1} parent=5 // pred_check
        %p305 = pneg %p304
      $region34: #{tpu_custom_call.1} parent=5 // pred_check_branch
        %307 = sbr.rel (%p305) target = $region36
      $region35: #{tpu_custom_call.1} parent=5 // pred_region
        // Predicated region
        $region37: #{tpu_custom_call.1} parent=35 // pred_check
          %p308 = pneg %p45
        $region38: #{tpu_custom_call.1} parent=35 // pred_check_branch
          %310 = sbr.rel (%p308) target = $region40
        $region39: #{tpu_custom_call.1} parent=35 // pred_region
          %s311 = sand.u32 %s35, 1
          %s312 = scalar_lea.sflag [#allocation7], %s311
          %s313 = sand.u32 %s35, 1
          %s314 = smul.addr %s313, 8
          %s315 = scalar_lea.vmem [#allocation6], %s314
          %s317 = ssub.s32 128, 128
          %318 = vsyncadd %s312, %s317
          %s319 = smul.addr %s25, 128
          %s320 = scalar_lea.hbm %s0, %s319
          %s322 = sshll.u32 %s315, 4
          %s323 = int_to_ptr.vmem [resolvable:$true] %s322
          %325 = dma.hbm_to_vmem [thread:$0]  %s320, 128, %s323, %s312
        $region40: #{tpu_custom_call.1} parent=35 // pred_fallthru
          _
        // Predicated region
        $region41: #{tpu_custom_call.1} parent=35 // pred_check
          %p326 = pneg %p71
        $region42: #{tpu_custom_call.1} parent=35 // pred_check_branch
          %328 = sbr.rel (%p326) target = $region44
        $region43: #{tpu_custom_call.1} parent=35 // pred_region
          %s329 = sand.u32 %s25, 1
          %s330 = scalar_lea.sflag [#allocation10], %s329
          %s331 = sand.u32 %s61, 1
          %s332 = smul.addr %s331, 8
          %s333 = scalar_lea.vmem [#allocation9], %s332
          %s335 = ssub.s32 128, 128
          %336 = vsyncadd %s330, %s335
          %s337 = smul.addr %s25, 128
          %s338 = scalar_lea.hbm %s1, %s337
          %s340 = sshll.u32 %s333, 4
          %s341 = int_to_ptr.vmem [resolvable:$true] %s340
          %343 = dma.hbm_to_vmem [thread:$0]  %s338, 128, %s341, %s330
        $region44: #{tpu_custom_call.1} parent=35 // pred_fallthru
          _
        // Predicated region
        $region45: #{tpu_custom_call.1} parent=35 // pred_check
          %p344 = pneg %p97
        $region46: #{tpu_custom_call.1} parent=35 // pred_check_branch
          %346 = sbr.rel (%p344) target = $region48
        $region47: #{tpu_custom_call.1} parent=35 // pred_region
          %s347 = sand.u32 %s25, 1
          %s348 = scalar_lea.sflag [#allocation10], %s347
          %s349 = sand.u32 %s87, 1
          %s350 = smul.addr %s349, 8
          %s351 = scalar_lea.vmem [#allocation11], %s350
          %s353 = ssub.s32 128, 128
          %354 = vsyncadd %s348, %s353
          %s355 = smul.addr %s25, 4
          %s356 = smul.addr %s355, 32
          %s357 = scalar_lea.hbm %s2, %s356
          %s358 = sshll.u32 %s351, 4
          %s359 = int_to_ptr.vmem [resolvable:$true] %s358
          %364 = dma.hbm_to_vmem [thread:$0]  %s357, 128, %s359, %s348, 32, 32, 2
        $region48: #{tpu_custom_call.1} parent=35 // pred_fallthru
          _
      $region36: #{tpu_custom_call.1} parent=5 // pred_fallthru
        _
      %p365 = scmp.le.s32.totalorder 1, %s25
      %p366 = scmp.lt.s32.totalorder %s25, 3
      %p367 = pnand %p365, %p366
      %p368 = pneg %p367
      // Predicated region
      $region49: #{tpu_custom_call.1} parent=5 // pred_check
        _
      $region50: #{tpu_custom_call.1} parent=5 // pred_check_branch
        %370 = sbr.rel (%p367) target = $region52
      $region51: #{tpu_custom_call.1} parent=5 // pred_region
        %s371 = ssub.s32 %s25, 1
        %s372 = sand.u32 %s38, 1
        %s373 = scalar_lea.sflag [#allocation7], %s372
        %s374 = sand.u32 %s38, 1
        %s375 = smul.addr %s374, 8
        %s376 = scalar_lea.vmem [#allocation6], %s375
        // Predicated region
        $region53: #{tpu_custom_call.1} parent=51 // pred_check
          %p377 = pneg %p51
        $region54: #{tpu_custom_call.1} parent=51 // pred_check_branch
          %379 = sbr.rel (%p377) target = $region56
        $region55: #{tpu_custom_call.1} parent=51 // pred_region
          %380 = dma.done %s373, 128
        $region56: #{tpu_custom_call.1} parent=51 // pred_fallthru
          _
        %s381 = sand.u32 %s30, 1
        %s382 = scalar_lea.sflag [#allocation10], %s381
        %s383 = sand.u32 %s64, 1
        %s384 = smul.addr %s383, 8
        %s385 = scalar_lea.vmem [#allocation9], %s384
        // Predicated region
        $region57: #{tpu_custom_call.1} parent=51 // pred_check
          %p386 = pneg %p77
        $region58: #{tpu_custom_call.1} parent=51 // pred_check_branch
          %388 = sbr.rel (%p386) target = $region60
        $region59: #{tpu_custom_call.1} parent=51 // pred_region
          %389 = dma.done %s382, 128
        $region60: #{tpu_custom_call.1} parent=51 // pred_fallthru
          _
        %s390 = sand.u32 %s30, 1
        %s391 = scalar_lea.sflag [#allocation10], %s390
        %s392 = sand.u32 %s90, 1
        %s393 = smul.addr %s392, 8
        %s394 = scalar_lea.vmem [#allocation11], %s393
        // Predicated region
        $region61: #{tpu_custom_call.1} parent=51 // pred_check
          %p395 = pneg %p103
        $region62: #{tpu_custom_call.1} parent=51 // pred_check_branch
          %397 = sbr.rel (%p395) target = $region64
        $region63: #{tpu_custom_call.1} parent=51 // pred_region
          %398 = dma.done %s391, 128
        $region64: #{tpu_custom_call.1} parent=51 // pred_fallthru
          _
        // Predicated region
        $region65: #{tpu_custom_call.1} parent=51 // pred_check
          %p399 = pneg %p124
        $region66: #{tpu_custom_call.1} parent=51 // pred_check_branch
          %401 = sbr.rel (%p399) target = $region68
        $region67: #{tpu_custom_call.1} parent=51 // pred_region
          %402 = dma.done [#allocation13], 512
        $region68: #{tpu_custom_call.1} parent=51 // pred_fallthru
          _
        // Predicated region
        $region69: #{tpu_custom_call.1} parent=51 // pred_check
          %p403 = pneg %p145
        $region70: #{tpu_custom_call.1} parent=51 // pred_check_branch
          %405 = sbr.rel (%p403) target = $region72
        $region71: #{tpu_custom_call.1} parent=51 // pred_region
          %406 = dma.done [#allocation13], 512
        $region72: #{tpu_custom_call.1} parent=51 // pred_fallthru
          _
        // Predicated region
        $region73: #{tpu_custom_call.1} parent=51 // pred_check
          %p407 = pneg %p166
        $region74: #{tpu_custom_call.1} parent=51 // pred_check_branch
          %409 = sbr.rel (%p407) target = $region76
        $region75: #{tpu_custom_call.1} parent=51 // pred_region
          %410 = dma.done [#allocation16], 512
        $region76: #{tpu_custom_call.1} parent=51 // pred_fallthru
          _
        // Predicated region
        $region77: #{tpu_custom_call.1} parent=51 // pred_check
          %p411 = pneg %p187
        $region78: #{tpu_custom_call.1} parent=51 // pred_check_branch
          %413 = sbr.rel (%p411) target = $region80
        $region79: #{tpu_custom_call.1} parent=51 // pred_region
          %414 = dma.done [#allocation16], 512
        $region80: #{tpu_custom_call.1} parent=51 // pred_fallthru
          _
        %s415 = sand.u32 %s38, 1
        %s416 = scalar_lea.sflag [#allocation7], %s415
        %s417 = sand.u32 %s38, 1
        %s418 = smul.addr %s417, 8
        %s419 = scalar_lea.vmem [#allocation6], %s418
        %p420 = pneg %p51
        %p421 = pneg %p48
        %s422 = sand.u32 %s30, 1
        %s423 = scalar_lea.sflag [#allocation10], %s422
        %s424 = sand.u32 %s64, 1
        %s425 = smul.addr %s424, 8
        %s426 = scalar_lea.vmem [#allocation9], %s425
        %p427 = pneg %p77
        %p428 = pneg %p74
        %s429 = sand.u32 %s30, 1
        %s430 = scalar_lea.sflag [#allocation10], %s429
        %s431 = sand.u32 %s90, 1
        %s432 = smul.addr %s431, 8
        %s433 = scalar_lea.vmem [#allocation11], %s432
        %p434 = pneg %p103
        %p435 = pneg %p100
        %p436 = pneg %p124
        %p437 = pneg %p121
        %p438 = pneg %p145
        %p439 = pneg %p142
        %p440 = pneg %p166
        %p441 = pneg %p163
        %p442 = pneg %p187
        %p443 = pneg %p184
        %p444 = pneg %p208
        %p445 = pneg %p205
        %p446 = pneg %p234
        %p447 = pneg %p231
        %s448 = sand.u32 %s221, 1
        %s449 = scalar_lea.sflag [#allocation8], %s448
        %s450 = sand.u32 %s221, 1
        %s451 = smul.addr %s450, 8
        %s452 = scalar_lea.vmem [#allocation18], %s451
        %v455 = vld [vmem:[%s376] sm:$0xff]
        %v456 = vld [vmem:[%s385] sm:$0xff]
        %v457 = vld [vmem:[#allocation12] sm:$0xff]
        %v458 = vld [vmem:[#allocation12 + $0x8] sm:$0xff]
        %v459 = vld [vmem:[#allocation12 + $0x10] sm:$0xff]
        %v460 = vld [vmem:[#allocation12 + $0x18] sm:$0xff]
        %vm461 = vcmask 261120
        %v463 = vsel %vm461, %v455, 0
        %465 = vmatprep.subr.mxu0 0.0
        %466 = vmatpush1.msra.mxu0 %v457
        %467 = vmatprep.subr.mxu0 0.0
        %468 = vmatpush1.msra.mxu0 %v458
        %469 = vmatprep.subr.mxu0 0.0
        %470 = vmatpush1.msra.mxu0 %v459
        %471 = vmatprep.subr.mxu0 0.0
        %472 = vmatpush1.msra.mxu0 %v460
        %473 = vmatprep.subr.mxu0 0.0
        %474 = vmatpush1.msra.mxu0 0.0
        %475 = vmatprep.subr.mxu0 0.0
        %476 = vmatpush1.msra.mxu0 0.0
        %477 = vmatprep.subr.mxu0 0.0
        %478 = vmatpush1.msra.mxu0 0.0
        %479 = vmatprep.subr.mxu0 0.0
        %480 = vmatpush1.msra.mxu0 0.0
        %481 = vmatprep.subr.mxu0 0.0
        %482 = vmatpush1.msra.mxu0 0.0
        %483 = vmatprep.subr.mxu0 0.0
        %484 = vmatpush1.msra.mxu0 0.0
        %485 = vmatprep.subr.mxu0 0.0
        %486 = vmatpush1.msra.mxu0 0.0
        %487 = vmatprep.subr.mxu0 0.0
        %488 = vmatpush1.msra.mxu0 0.0
        %489 = vmatprep.subr.mxu0 0.0
        %490 = vmatpush1.msra.mxu0 0.0
        %491 = vmatprep.subr.mxu0 0.0
        %492 = vmatpush1.msra.mxu0 0.0
        %493 = vmatprep.subr.mxu0 0.0
        %494 = vmatpush1.msra.mxu0 0.0
        %495 = vmatprep.subr.mxu0 0.0
        %496 = vmatpush1.msra.mxu0 0.0
        %497 = vmatprep.subr.mxu0 0.0
        %498 = vmatpush1.msra.mxu0 0.0
        %499 = vmatprep.subr.mxu0 0.0
        %500 = vmatpush1.msra.mxu0 0.0
        %501 = vmatprep.subr.mxu0 0.0
        %502 = vmatpush1.msra.mxu0 0.0
        %503 = vmatprep.subr.mxu0 0.0
        %504 = vmatpush1.msra.mxu0 0.0
        %505 = vmatprep.subr.mxu0 0.0
        %506 = vmatpush1.msra.mxu0 0.0
        %507 = vmatprep.subr.mxu0 0.0
        %508 = vmatpush1.msra.mxu0 0.0
        %509 = vmatprep.subr.mxu0 0.0
        %510 = vmatpush1.msra.mxu0 0.0
        %511 = vmatprep.subr.mxu0 0.0
        %512 = vmatpush1.msra.mxu0 0.0
        %513 = vmatprep.subr.mxu0 0.0
        %514 = vmatpush1.msra.mxu0 0.0
        %515 = vmatprep.subr.mxu0 0.0
        %516 = vmatpush1.msra.mxu0 0.0
        %517 = vmatprep.subr.mxu0 0.0
        %518 = vmatpush1.msra.mxu0 0.0
        %519 = vmatprep.subr.mxu0 0.0
        %520 = vmatpush1.msra.mxu0 0.0
        %521 = vmatprep.subr.mxu0 0.0
        %522 = vmatpush1.msra.mxu0 0.0
        %523 = vmatprep.subr.mxu0 0.0
        %524 = vmatpush1.msra.mxu0 0.0
        %525 = vmatprep.subr.mxu0 0.0
        %526 = vmatpush1.msra.mxu0 0.0
        %527 = vmatprep.subr.mxu0 0.0
        %528 = vmatpush1.msra.mxu0 0.0
        %529 = vmatprep.mubr.f32.mxu0 0.0
        %530 = vmatmul.mubr.f32.gmra.mrb[0].mxu0 %v463
        %v531 = vpop.f32.mrb[0].mxu0
        %v532 = vadd.f32 0.0, %v531
        %v533 = vpop.f32.mrb[0].mxu0
        %534 = vdwg.mxu0
        %535 = vst.msk [vmem:[#allocation2] sm:$0xff] %vm461, %v532
        %v536 = vld [vmem:[#allocation14] sm:$0xff]
        %v537 = vld [vmem:[#allocation14 + $0x8] sm:$0xff]
        %v538 = vld [vmem:[#allocation14 + $0x10] sm:$0xff]
        %v539 = vld [vmem:[#allocation14 + $0x18] sm:$0xff]
        %v541 = vsel %vm461, %v456, 0
        %543 = vmatprep.subr.mxu0 0.0
        %544 = vmatpush1.msra.mxu0 %v536
        %545 = vmatprep.subr.mxu0 0.0
        %546 = vmatpush1.msra.mxu0 %v537
        %547 = vmatprep.subr.mxu0 0.0
        %548 = vmatpush1.msra.mxu0 %v538
        %549 = vmatprep.subr.mxu0 0.0
        %550 = vmatpush1.msra.mxu0 %v539
        %551 = vmatprep.subr.mxu0 0.0
        %552 = vmatpush1.msra.mxu0 0.0
        %553 = vmatprep.subr.mxu0 0.0
        %554 = vmatpush1.msra.mxu0 0.0
        %555 = vmatprep.subr.mxu0 0.0
        %556 = vmatpush1.msra.mxu0 0.0
        %557 = vmatprep.subr.mxu0 0.0
        %558 = vmatpush1.msra.mxu0 0.0
        %559 = vmatprep.subr.mxu0 0.0
        %560 = vmatpush1.msra.mxu0 0.0
        %561 = vmatprep.subr.mxu0 0.0
        %562 = vmatpush1.msra.mxu0 0.0
        %563 = vmatprep.subr.mxu0 0.0
        %564 = vmatpush1.msra.mxu0 0.0
        %565 = vmatprep.subr.mxu0 0.0
        %566 = vmatpush1.msra.mxu0 0.0
        %567 = vmatprep.subr.mxu0 0.0
        %568 = vmatpush1.msra.mxu0 0.0
        %569 = vmatprep.subr.mxu0 0.0
        %570 = vmatpush1.msra.mxu0 0.0
        %571 = vmatprep.subr.mxu0 0.0
        %572 = vmatpush1.msra.mxu0 0.0
        %573 = vmatprep.subr.mxu0 0.0
        %574 = vmatpush1.msra.mxu0 0.0
        %575 = vmatprep.subr.mxu0 0.0
        %576 = vmatpush1.msra.mxu0 0.0
        %577 = vmatprep.subr.mxu0 0.0
        %578 = vmatpush1.msra.mxu0 0.0
        %579 = vmatprep.subr.mxu0 0.0
        %580 = vmatpush1.msra.mxu0 0.0
        %581 = vmatprep.subr.mxu0 0.0
        %582 = vmatpush1.msra.mxu0 0.0
        %583 = vmatprep.subr.mxu0 0.0
        %584 = vmatpush1.msra.mxu0 0.0
        %585 = vmatprep.subr.mxu0 0.0
        %586 = vmatpush1.msra.mxu0 0.0
        %587 = vmatprep.subr.mxu0 0.0
        %588 = vmatpush1.msra.mxu0 0.0
        %589 = vmatprep.subr.mxu0 0.0
        %590 = vmatpush1.msra.mxu0 0.0
        %591 = vmatprep.subr.mxu0 0.0
        %592 = vmatpush1.msra.mxu0 0.0
        %593 = vmatprep.subr.mxu0 0.0
        %594 = vmatpush1.msra.mxu0 0.0
        %595 = vmatprep.subr.mxu0 0.0
        %596 = vmatpush1.msra.mxu0 0.0
        %597 = vmatprep.subr.mxu0 0.0
        %598 = vmatpush1.msra.mxu0 0.0
        %599 = vmatprep.subr.mxu0 0.0
        %600 = vmatpush1.msra.mxu0 0.0
        %601 = vmatprep.subr.mxu0 0.0
        %602 = vmatpush1.msra.mxu0 0.0
        %603 = vmatprep.subr.mxu0 0.0
        %604 = vmatpush1.msra.mxu0 0.0
        %605 = vmatprep.subr.mxu0 0.0
        %606 = vmatpush1.msra.mxu0 0.0
        %607 = vmatprep.mubr.f32.mxu0 0.0
        %608 = vmatmul.mubr.f32.gmra.mrb[0].mxu0 %v541
        %v609 = vpop.f32.mrb[0].mxu0
        %v610 = vadd.f32 0.0, %v609
        %v611 = vpop.f32.mrb[0].mxu0
        %612 = vdwg.mxu0
        %613 = vst.msk [vmem:[#allocation3] sm:$0xff] %vm461, %v610
        %v614 = vld [vmem:[#allocation15] sm:$0xff]
        %v615 = vld [vmem:[#allocation15 + $0x8] sm:$0xff]
        %v616 = vld [vmem:[#allocation15 + $0x10] sm:$0xff]
        %v617 = vld [vmem:[#allocation15 + $0x18] sm:$0xff]
        %618 = vmatprep.subr.mxu0 0.0
        %619 = vmatpush1.msra.mxu0 %v614
        %620 = vmatprep.subr.mxu0 0.0
        %621 = vmatpush1.msra.mxu0 %v615
        %622 = vmatprep.subr.mxu0 0.0
        %623 = vmatpush1.msra.mxu0 %v616
        %624 = vmatprep.subr.mxu0 0.0
        %625 = vmatpush1.msra.mxu0 %v617
        %626 = vmatprep.subr.mxu0 0.0
        %627 = vmatpush1.msra.mxu0 0.0
        %628 = vmatprep.subr.mxu0 0.0
        %629 = vmatpush1.msra.mxu0 0.0
        %630 = vmatprep.subr.mxu0 0.0
        %631 = vmatpush1.msra.mxu0 0.0
        %632 = vmatprep.subr.mxu0 0.0
        %633 = vmatpush1.msra.mxu0 0.0
        %634 = vmatprep.subr.mxu0 0.0
        %635 = vmatpush1.msra.mxu0 0.0
        %636 = vmatprep.subr.mxu0 0.0
        %637 = vmatpush1.msra.mxu0 0.0
        %638 = vmatprep.subr.mxu0 0.0
        %639 = vmatpush1.msra.mxu0 0.0
        %640 = vmatprep.subr.mxu0 0.0
        %641 = vmatpush1.msra.mxu0 0.0
        %642 = vmatprep.subr.mxu0 0.0
        %643 = vmatpush1.msra.mxu0 0.0
        %644 = vmatprep.subr.mxu0 0.0
        %645 = vmatpush1.msra.mxu0 0.0
        %646 = vmatprep.subr.mxu0 0.0
        %647 = vmatpush1.msra.mxu0 0.0
        %648 = vmatprep.subr.mxu0 0.0
        %649 = vmatpush1.msra.mxu0 0.0
        %650 = vmatprep.subr.mxu0 0.0
        %651 = vmatpush1.msra.mxu0 0.0
        %652 = vmatprep.subr.mxu0 0.0
        %653 = vmatpush1.msra.mxu0 0.0
        %654 = vmatprep.subr.mxu0 0.0
        %655 = vmatpush1.msra.mxu0 0.0
        %656 = vmatprep.subr.mxu0 0.0
        %657 = vmatpush1.msra.mxu0 0.0
        %658 = vmatprep.subr.mxu0 0.0
        %659 = vmatpush1.msra.mxu0 0.0
        %660 = vmatprep.subr.mxu0 0.0
        %661 = vmatpush1.msra.mxu0 0.0
        %662 = vmatprep.subr.mxu0 0.0
        %663 = vmatpush1.msra.mxu0 0.0
        %664 = vmatprep.subr.mxu0 0.0
        %665 = vmatpush1.msra.mxu0 0.0
        %666 = vmatprep.subr.mxu0 0.0
        %667 = vmatpush1.msra.mxu0 0.0
        %668 = vmatprep.subr.mxu0 0.0
        %669 = vmatpush1.msra.mxu0 0.0
        %670 = vmatprep.subr.mxu0 0.0
        %671 = vmatpush1.msra.mxu0 0.0
        %672 = vmatprep.subr.mxu0 0.0
        %673 = vmatpush1.msra.mxu0 0.0
        %674 = vmatprep.subr.mxu0 0.0
        %675 = vmatpush1.msra.mxu0 0.0
        %676 = vmatprep.subr.mxu0 0.0
        %677 = vmatpush1.msra.mxu0 0.0
        %678 = vmatprep.subr.mxu0 0.0
        %679 = vmatpush1.msra.mxu0 0.0
        %680 = vmatprep.subr.mxu0 0.0
        %681 = vmatpush1.msra.mxu0 0.0
        %682 = vmatprep.mubr.f32.mxu0 0.0
        %683 = vmatmul.mubr.f32.gmra.mrb[0].mxu0 %v541
        %v684 = vpop.f32.mrb[0].mxu0
        %v685 = vadd.f32 0.0, %v684
        %v686 = vpop.f32.mrb[0].mxu0
        %687 = vdwg.mxu0
        %688 = vst.msk [vmem:[#allocation4] sm:$0xff] %vm461, %v685
        %v689 = vld [vmem:[#allocation2] sm:$0xff]
        %v690 = vld [vmem:[#allocation3] sm:$0xff]
        %v691 = vld [vmem:[#allocation4] sm:$0xff]
        %vm692 = vcmask 64512
        %v694 = vsel %vm692, %v689, 0
        %v697 = vsel %vm692, %v690, 0
        %699 = vmatprep.subr.mxu0 0.0
        %700 = vmatpush1.xpose.msra.mxu0 %v697
        %701 = vmatprep.subr.mxu0 0.0
        %702 = vmatpush1.xpose.msra.mxu0 0.0
        %703 = vmatprep.subr.mxu0 0.0
        %704 = vmatpush1.xpose.msra.mxu0 0.0
        %705 = vmatprep.subr.mxu0 0.0
        %706 = vmatpush1.xpose.msra.mxu0 0.0
        %707 = vmatprep.subr.mxu0 0.0
        %708 = vmatpush1.xpose.msra.mxu0 0.0
        %709 = vmatprep.subr.mxu0 0.0
        %710 = vmatpush1.xpose.msra.mxu0 0.0
        %711 = vmatprep.subr.mxu0 0.0
        %712 = vmatpush1.xpose.msra.mxu0 0.0
        %713 = vmatprep.subr.mxu0 0.0
        %714 = vmatpush1.xpose.msra.mxu0 0.0
        %715 = vmatprep.subr.mxu0 0.0
        %716 = vmatpush1.xpose.msra.mxu0 0.0
        %717 = vmatprep.subr.mxu0 0.0
        %718 = vmatpush1.xpose.msra.mxu0 0.0
        %719 = vmatprep.subr.mxu0 0.0
        %720 = vmatpush1.xpose.msra.mxu0 0.0
        %721 = vmatprep.subr.mxu0 0.0
        %722 = vmatpush1.xpose.msra.mxu0 0.0
        %723 = vmatprep.subr.mxu0 0.0
        %724 = vmatpush1.xpose.msra.mxu0 0.0
        %725 = vmatprep.subr.mxu0 0.0
        %726 = vmatpush1.xpose.msra.mxu0 0.0
        %727 = vmatprep.subr.mxu0 0.0
        %728 = vmatpush1.xpose.msra.mxu0 0.0
        %729 = vmatprep.subr.mxu0 0.0
        %730 = vmatpush1.xpose.msra.mxu0 0.0
        %731 = vmatprep.subr.mxu0 0.0
        %732 = vmatpush1.xpose.msra.mxu0 0.0
        %733 = vmatprep.subr.mxu0 0.0
        %734 = vmatpush1.xpose.msra.mxu0 0.0
        %735 = vmatprep.subr.mxu0 0.0
        %736 = vmatpush1.xpose.msra.mxu0 0.0
        %737 = vmatprep.subr.mxu0 0.0
        %738 = vmatpush1.xpose.msra.mxu0 0.0
        %739 = vmatprep.subr.mxu0 0.0
        %740 = vmatpush1.xpose.msra.mxu0 0.0
        %741 = vmatprep.subr.mxu0 0.0
        %742 = vmatpush1.xpose.msra.mxu0 0.0
        %743 = vmatprep.subr.mxu0 0.0
        %744 = vmatpush1.xpose.msra.mxu0 0.0
        %745 = vmatprep.subr.mxu0 0.0
        %746 = vmatpush1.xpose.msra.mxu0 0.0
        %747 = vmatprep.subr.mxu0 0.0
        %748 = vmatpush1.xpose.msra.mxu0 0.0
        %749 = vmatprep.subr.mxu0 0.0
        %750 = vmatpush1.xpose.msra.mxu0 0.0
        %751 = vmatprep.subr.mxu0 0.0
        %752 = vmatpush1.xpose.msra.mxu0 0.0
        %753 = vmatprep.subr.mxu0 0.0
        %754 = vmatpush1.xpose.msra.mxu0 0.0
        %755 = vmatprep.subr.mxu0 0.0
        %756 = vmatpush1.xpose.msra.mxu0 0.0
        %757 = vmatprep.subr.mxu0 0.0
        %758 = vmatpush1.xpose.msra.mxu0 0.0
        %759 = vmatprep.subr.mxu0 0.0
        %760 = vmatpush1.xpose.msra.mxu0 0.0
        %761 = vmatprep.subr.mxu0 0.0
        %762 = vmatpush1.xpose.msra.mxu0 0.0
        %763 = vmatprep.mubr.f32.mxu0 0.0
        %764 = vmatmul.mubr.f32.gmra.mrb[0].mxu0 %v694
        %v765 = vpop.f32.mrb[0].mxu0
        %v766 = vadd.f32 0.0, %v765
        %v767 = vpop.f32.mrb[0].mxu0
        %768 = vdwg.mxu0
        %v769 = vld [vmem:[%s394] sm:$0x3]
        %vm770 = vnez %v769
        %v771 = vsel %vm770, 16843009, 0
        %v772 = vunpack.c.0.s8 %v771
        %vm773 = vcmp.ne.s32.totalorder %v772, 0
        %v774 = vsel %vm773, -inf, %v766
        %v775 = vsel %vm692, %v774, -inf
        %776 = vmax.xlane.f32.xlu0 %v775
        %v777 = vpop.xlane.xlu0 %776
        %v778 = vsub.f32 %v774, %v777
        %v779 = vmul.f32 %v778, 1.442695
        %v780 = vpow.pop %v779
        %v781 = vsel %vm692, %v780, 0.0
        %782 = vadd.xlane.f32.xlu0 %v781
        %v783 = vpop.xlane.xlu0 %782
        %v784 = vrcp.pop %v783
        %v785 = vmul.f32 %v780, %v784
        %v787 = vsel %vm692, %v785, 0
        %789 = vmatprep.subr.mxu0 0.0
        %790 = vmatpush1.msra.mxu0 %v691
        %791 = vmatprep.subr.mxu0 0.0
        %792 = vmatpush1.msra.mxu0 0.0
        %793 = vmatprep.subr.mxu0 0.0
        %794 = vmatpush1.msra.mxu0 0.0
        %795 = vmatprep.subr.mxu0 0.0
        %796 = vmatpush1.msra.mxu0 0.0
        %797 = vmatprep.subr.mxu0 0.0
        %798 = vmatpush1.msra.mxu0 0.0
        %799 = vmatprep.subr.mxu0 0.0
        %800 = vmatpush1.msra.mxu0 0.0
        %801 = vmatprep.subr.mxu0 0.0
        %802 = vmatpush1.msra.mxu0 0.0
        %803 = vmatprep.subr.mxu0 0.0
        %804 = vmatpush1.msra.mxu0 0.0
        %805 = vmatprep.subr.mxu0 0.0
        %806 = vmatpush1.msra.mxu0 0.0
        %807 = vmatprep.subr.mxu0 0.0
        %808 = vmatpush1.msra.mxu0 0.0
        %809 = vmatprep.subr.mxu0 0.0
        %810 = vmatpush1.msra.mxu0 0.0
        %811 = vmatprep.subr.mxu0 0.0
        %812 = vmatpush1.msra.mxu0 0.0
        %813 = vmatprep.subr.mxu0 0.0
        %814 = vmatpush1.msra.mxu0 0.0
        %815 = vmatprep.subr.mxu0 0.0
        %816 = vmatpush1.msra.mxu0 0.0
        %817 = vmatprep.subr.mxu0 0.0
        %818 = vmatpush1.msra.mxu0 0.0
        %819 = vmatprep.subr.mxu0 0.0
        %820 = vmatpush1.msra.mxu0 0.0
        %821 = vmatprep.subr.mxu0 0.0
        %822 = vmatpush1.msra.mxu0 0.0
        %823 = vmatprep.subr.mxu0 0.0
        %824 = vmatpush1.msra.mxu0 0.0
        %825 = vmatprep.subr.mxu0 0.0
        %826 = vmatpush1.msra.mxu0 0.0
        %827 = vmatprep.subr.mxu0 0.0
        %828 = vmatpush1.msra.mxu0 0.0
        %829 = vmatprep.subr.mxu0 0.0
        %830 = vmatpush1.msra.mxu0 0.0
        %831 = vmatprep.subr.mxu0 0.0
        %832 = vmatpush1.msra.mxu0 0.0
        %833 = vmatprep.subr.mxu0 0.0
        %834 = vmatpush1.msra.mxu0 0.0
        %835 = vmatprep.subr.mxu0 0.0
        %836 = vmatpush1.msra.mxu0 0.0
        %837 = vmatprep.subr.mxu0 0.0
        %838 = vmatpush1.msra.mxu0 0.0
        %839 = vmatprep.subr.mxu0 0.0
        %840 = vmatpush1.msra.mxu0 0.0
        %841 = vmatprep.subr.mxu0 0.0
        %842 = vmatpush1.msra.mxu0 0.0
        %843 = vmatprep.subr.mxu0 0.0
        %844 = vmatpush1.msra.mxu0 0.0
        %845 = vmatprep.subr.mxu0 0.0
        %846 = vmatpush1.msra.mxu0 0.0
        %847 = vmatprep.subr.mxu0 0.0
        %848 = vmatpush1.msra.mxu0 0.0
        %849 = vmatprep.subr.mxu0 0.0
        %850 = vmatpush1.msra.mxu0 0.0
        %851 = vmatprep.subr.mxu0 0.0
        %852 = vmatpush1.msra.mxu0 0.0
        %853 = vmatprep.mubr.f32.mxu0 0.0
        %854 = vmatmul.mubr.f32.gmra.mrb[0].mxu0 %v787
        %v855 = vpop.f32.mrb[0].mxu0
        %v856 = vadd.f32 0.0, %v855
        %v857 = vpop.f32.mrb[0].mxu0
        %858 = vdwg.mxu0
        %859 = vst.msk [vmem:[#allocation5] sm:$0xff] %vm692, %v856
        %v860 = vld [vmem:[#allocation2] sm:$0xff]
        %v861 = vld [vmem:[#allocation3] sm:$0xff]
        %v862 = vld [vmem:[#allocation4] sm:$0xff]
        %864 = vrot.lane.b32.xlu0 %v860, 120
        %v865 = vpop.permute.xlu0 %864
        %867 = vrot.lane.b32.xlu0 %v861, 120
        %v868 = vpop.permute.xlu0 %867
        %v869 = vsel %vm692, %v865, 0
        %v871 = vsel %vm692, %v868, 0
        %873 = vmatprep.subr.mxu0 0.0
        %874 = vmatpush1.xpose.msra.mxu0 %v871
        %875 = vmatprep.subr.mxu0 0.0
        %876 = vmatpush1.xpose.msra.mxu0 0.0
        %877 = vmatprep.subr.mxu0 0.0
        %878 = vmatpush1.xpose.msra.mxu0 0.0
        %879 = vmatprep.subr.mxu0 0.0
        %880 = vmatpush1.xpose.msra.mxu0 0.0
        %881 = vmatprep.subr.mxu0 0.0
        %882 = vmatpush1.xpose.msra.mxu0 0.0
        %883 = vmatprep.subr.mxu0 0.0
        %884 = vmatpush1.xpose.msra.mxu0 0.0
        %885 = vmatprep.subr.mxu0 0.0
        %886 = vmatpush1.xpose.msra.mxu0 0.0
        %887 = vmatprep.subr.mxu0 0.0
        %888 = vmatpush1.xpose.msra.mxu0 0.0
        %889 = vmatprep.subr.mxu0 0.0
        %890 = vmatpush1.xpose.msra.mxu0 0.0
        %891 = vmatprep.subr.mxu0 0.0
        %892 = vmatpush1.xpose.msra.mxu0 0.0
        %893 = vmatprep.subr.mxu0 0.0
        %894 = vmatpush1.xpose.msra.mxu0 0.0
        %895 = vmatprep.subr.mxu0 0.0
        %896 = vmatpush1.xpose.msra.mxu0 0.0
        %897 = vmatprep.subr.mxu0 0.0
        %898 = vmatpush1.xpose.msra.mxu0 0.0
        %899 = vmatprep.subr.mxu0 0.0
        %900 = vmatpush1.xpose.msra.mxu0 0.0
        %901 = vmatprep.subr.mxu0 0.0
        %902 = vmatpush1.xpose.msra.mxu0 0.0
        %903 = vmatprep.subr.mxu0 0.0
        %904 = vmatpush1.xpose.msra.mxu0 0.0
        %905 = vmatprep.subr.mxu0 0.0
        %906 = vmatpush1.xpose.msra.mxu0 0.0
        %907 = vmatprep.subr.mxu0 0.0
        %908 = vmatpush1.xpose.msra.mxu0 0.0
        %909 = vmatprep.subr.mxu0 0.0
        %910 = vmatpush1.xpose.msra.mxu0 0.0
        %911 = vmatprep.subr.mxu0 0.0
        %912 = vmatpush1.xpose.msra.mxu0 0.0
        %913 = vmatprep.subr.mxu0 0.0
        %914 = vmatpush1.xpose.msra.mxu0 0.0
        %915 = vmatprep.subr.mxu0 0.0
        %916 = vmatpush1.xpose.msra.mxu0 0.0
        %917 = vmatprep.subr.mxu0 0.0
        %918 = vmatpush1.xpose.msra.mxu0 0.0
        %919 = vmatprep.subr.mxu0 0.0
        %920 = vmatpush1.xpose.msra.mxu0 0.0
        %921 = vmatprep.subr.mxu0 0.0
        %922 = vmatpush1.xpose.msra.mxu0 0.0
        %923 = vmatprep.subr.mxu0 0.0
        %924 = vmatpush1.xpose.msra.mxu0 0.0
        %925 = vmatprep.subr.mxu0 0.0
        %926 = vmatpush1.xpose.msra.mxu0 0.0
        %927 = vmatprep.subr.mxu0 0.0
        %928 = vmatpush1.xpose.msra.mxu0 0.0
        %929 = vmatprep.subr.mxu0 0.0
        %930 = vmatpush1.xpose.msra.mxu0 0.0
        %931 = vmatprep.subr.mxu0 0.0
        %932 = vmatpush1.xpose.msra.mxu0 0.0
        %933 = vmatprep.subr.mxu0 0.0
        %934 = vmatpush1.xpose.msra.mxu0 0.0
        %935 = vmatprep.subr.mxu0 0.0
        %936 = vmatpush1.xpose.msra.mxu0 0.0
        %937 = vmatprep.mubr.f32.mxu0 0.0
        %938 = vmatmul.mubr.f32.gmra.mrb[0].mxu0 %v869
        %v939 = vpop.f32.mrb[0].mxu0
        %v940 = vadd.f32 0.0, %v939
        %v941 = vpop.f32.mrb[0].mxu0
        %942 = vdwg.mxu0
        %s943 = scalar_lea.vmem %s394, 2 [#allocation11]
        %v944 = vld [vmem:[%s943] sm:$0x3]
        %vm945 = vnez %v944
        %v946 = vsel %vm945, 16843009, 0
        %v947 = vunpack.c.0.s8 %v946
        %vm948 = vcmp.ne.s32.totalorder %v947, 0
        %v949 = vsel %vm948, -inf, %v940
        %v950 = vsel %vm692, %v949, -inf
        %951 = vmax.xlane.f32.xlu0 %v950
        %v952 = vpop.xlane.xlu0 %951
        %v953 = vsub.f32 %v949, %v952
        %v954 = vmul.f32 %v953, 1.442695
        %v955 = vpow.pop %v954
        %v956 = vsel %vm692, %v955, 0.0
        %957 = vadd.xlane.f32.xlu0 %v956
        %v958 = vpop.xlane.xlu0 %957
        %v959 = vrcp.pop %v958
        %v960 = vmul.f32 %v955, %v959
        %962 = vrot.lane.b32.xlu0 %v862, 120
        %v963 = vpop.permute.xlu0 %962
        %v966 = vsel %vm692, %v960, 0
        %968 = vmatprep.subr.mxu0 0.0
        %969 = vmatpush1.msra.mxu0 %v963
        %970 = vmatprep.subr.mxu0 0.0
        %971 = vmatpush1.msra.mxu0 0.0
        %972 = vmatprep.subr.mxu0 0.0
        %973 = vmatpush1.msra.mxu0 0.0
        %974 = vmatprep.subr.mxu0 0.0
        %975 = vmatpush1.msra.mxu0 0.0
        %976 = vmatprep.subr.mxu0 0.0
        %977 = vmatpush1.msra.mxu0 0.0
        %978 = vmatprep.subr.mxu0 0.0
        %979 = vmatpush1.msra.mxu0 0.0
        %980 = vmatprep.subr.mxu0 0.0
        %981 = vmatpush1.msra.mxu0 0.0
        %982 = vmatprep.subr.mxu0 0.0
        %983 = vmatpush1.msra.mxu0 0.0
        %984 = vmatprep.subr.mxu0 0.0
        %985 = vmatpush1.msra.mxu0 0.0
        %986 = vmatprep.subr.mxu0 0.0
        %987 = vmatpush1.msra.mxu0 0.0
        %988 = vmatprep.subr.mxu0 0.0
        %989 = vmatpush1.msra.mxu0 0.0
        %990 = vmatprep.subr.mxu0 0.0
        %991 = vmatpush1.msra.mxu0 0.0
        %992 = vmatprep.subr.mxu0 0.0
        %993 = vmatpush1.msra.mxu0 0.0
        %994 = vmatprep.subr.mxu0 0.0
        %995 = vmatpush1.msra.mxu0 0.0
        %996 = vmatprep.subr.mxu0 0.0
        %997 = vmatpush1.msra.mxu0 0.0
        %998 = vmatprep.subr.mxu0 0.0
        %999 = vmatpush1.msra.mxu0 0.0
        %1000 = vmatprep.subr.mxu0 0.0
        %1001 = vmatpush1.msra.mxu0 0.0
        %1002 = vmatprep.subr.mxu0 0.0
        %1003 = vmatpush1.msra.mxu0 0.0
        %1004 = vmatprep.subr.mxu0 0.0
        %1005 = vmatpush1.msra.mxu0 0.0
        %1006 = vmatprep.subr.mxu0 0.0
        %1007 = vmatpush1.msra.mxu0 0.0
        %1008 = vmatprep.subr.mxu0 0.0
        %1009 = vmatpush1.msra.mxu0 0.0
        %1010 = vmatprep.subr.mxu0 0.0
        %1011 = vmatpush1.msra.mxu0 0.0
        %1012 = vmatprep.subr.mxu0 0.0
        %1013 = vmatpush1.msra.mxu0 0.0
        %1014 = vmatprep.subr.mxu0 0.0
        %1015 = vmatpush1.msra.mxu0 0.0
        %1016 = vmatprep.subr.mxu0 0.0
        %1017 = vmatpush1.msra.mxu0 0.0
        %1018 = vmatprep.subr.mxu0 0.0
        %1019 = vmatpush1.msra.mxu0 0.0
        %1020 = vmatprep.subr.mxu0 0.0
        %1021 = vmatpush1.msra.mxu0 0.0
        %1022 = vmatprep.subr.mxu0 0.0
        %1023 = vmatpush1.msra.mxu0 0.0
        %1024 = vmatprep.subr.mxu0 0.0
        %1025 = vmatpush1.msra.mxu0 0.0
        %1026 = vmatprep.subr.mxu0 0.0
        %1027 = vmatpush1.msra.mxu0 0.0
        %1028 = vmatprep.subr.mxu0 0.0
        %1029 = vmatpush1.msra.mxu0 0.0
        %1030 = vmatprep.subr.mxu0 0.0
        %1031 = vmatpush1.msra.mxu0 0.0
        %1032 = vmatprep.mubr.f32.mxu0 0.0
        %1033 = vmatmul.mubr.f32.gmra.mrb[0].mxu0 %v966
        %v1034 = vpop.f32.mrb[0].mxu0
        %v1035 = vadd.f32 0.0, %v1034
        %v1036 = vpop.f32.mrb[0].mxu0
        %1037 = vdwg.mxu0
        %1039 = vrot.lane.b32.xlu0 %v1035, 8
        %v1040 = vpop.permute.xlu0 %1039
        %vm1042 = vcmask 130112
        %1043 = vst.msk [vmem:[#allocation5] sm:$0xff] %vm1042, %v1040
        %v1044 = vld [vmem:[#allocation2] sm:$0xff]
        %v1045 = vld [vmem:[#allocation3] sm:$0xff]
        %v1046 = vld [vmem:[#allocation4] sm:$0xff]
        %1048 = vrot.lane.b32.xlu0 %v1044, 112
        %v1049 = vpop.permute.xlu0 %1048
        %1051 = vrot.lane.b32.xlu0 %v1045, 112
        %v1052 = vpop.permute.xlu0 %1051
        %v1053 = vsel %vm692, %v1049, 0
        %v1055 = vsel %vm692, %v1052, 0
        %1057 = vmatprep.subr.mxu0 0.0
        %1058 = vmatpush1.xpose.msra.mxu0 %v1055
        %1059 = vmatprep.subr.mxu0 0.0
        %1060 = vmatpush1.xpose.msra.mxu0 0.0
        %1061 = vmatprep.subr.mxu0 0.0
        %1062 = vmatpush1.xpose.msra.mxu0 0.0
        %1063 = vmatprep.subr.mxu0 0.0
        %1064 = vmatpush1.xpose.msra.mxu0 0.0
        %1065 = vmatprep.subr.mxu0 0.0
        %1066 = vmatpush1.xpose.msra.mxu0 0.0
        %1067 = vmatprep.subr.mxu0 0.0
        %1068 = vmatpush1.xpose.msra.mxu0 0.0
        %1069 = vmatprep.subr.mxu0 0.0
        %1070 = vmatpush1.xpose.msra.mxu0 0.0
        %1071 = vmatprep.subr.mxu0 0.0
        %1072 = vmatpush1.xpose.msra.mxu0 0.0
        %1073 = vmatprep.subr.mxu0 0.0
        %1074 = vmatpush1.xpose.msra.mxu0 0.0
        %1075 = vmatprep.subr.mxu0 0.0
        %1076 = vmatpush1.xpose.msra.mxu0 0.0
        %1077 = vmatprep.subr.mxu0 0.0
        %1078 = vmatpush1.xpose.msra.mxu0 0.0
        %1079 = vmatprep.subr.mxu0 0.0
        %1080 = vmatpush1.xpose.msra.mxu0 0.0
        %1081 = vmatprep.subr.mxu0 0.0
        %1082 = vmatpush1.xpose.msra.mxu0 0.0
        %1083 = vmatprep.subr.mxu0 0.0
        %1084 = vmatpush1.xpose.msra.mxu0 0.0
        %1085 = vmatprep.subr.mxu0 0.0
        %1086 = vmatpush1.xpose.msra.mxu0 0.0
        %1087 = vmatprep.subr.mxu0 0.0
        %1088 = vmatpush1.xpose.msra.mxu0 0.0
        %1089 = vmatprep.subr.mxu0 0.0
        %1090 = vmatpush1.xpose.msra.mxu0 0.0
        %1091 = vmatprep.subr.mxu0 0.0
        %1092 = vmatpush1.xpose.msra.mxu0 0.0
        %1093 = vmatprep.subr.mxu0 0.0
        %1094 = vmatpush1.xpose.msra.mxu0 0.0
        %1095 = vmatprep.subr.mxu0 0.0
        %1096 = vmatpush1.xpose.msra.mxu0 0.0
        %1097 = vmatprep.subr.mxu0 0.0
        %1098 = vmatpush1.xpose.msra.mxu0 0.0
        %1099 = vmatprep.subr.mxu0 0.0
        %1100 = vmatpush1.xpose.msra.mxu0 0.0
        %1101 = vmatprep.subr.mxu0 0.0
        %1102 = vmatpush1.xpose.msra.mxu0 0.0
        %1103 = vmatprep.subr.mxu0 0.0
        %1104 = vmatpush1.xpose.msra.mxu0 0.0
        %1105 = vmatprep.subr.mxu0 0.0
        %1106 = vmatpush1.xpose.msra.mxu0 0.0
        %1107 = vmatprep.subr.mxu0 0.0
        %1108 = vmatpush1.xpose.msra.mxu0 0.0
        %1109 = vmatprep.subr.mxu0 0.0
        %1110 = vmatpush1.xpose.msra.mxu0 0.0
        %1111 = vmatprep.subr.mxu0 0.0
        %1112 = vmatpush1.xpose.msra.mxu0 0.0
        %1113 = vmatprep.subr.mxu0 0.0
        %1114 = vmatpush1.xpose.msra.mxu0 0.0
        %1115 = vmatprep.subr.mxu0 0.0
        %1116 = vmatpush1.xpose.msra.mxu0 0.0
        %1117 = vmatprep.subr.mxu0 0.0
        %1118 = vmatpush1.xpose.msra.mxu0 0.0
        %1119 = vmatprep.subr.mxu0 0.0
        %1120 = vmatpush1.xpose.msra.mxu0 0.0
        %1121 = vmatprep.mubr.f32.mxu0 0.0
        %1122 = vmatmul.mubr.f32.gmra.mrb[0].mxu0 %v1053
        %v1123 = vpop.f32.mrb[0].mxu0
        %v1124 = vadd.f32 0.0, %v1123
        %v1125 = vpop.f32.mrb[0].mxu0
        %1126 = vdwg.mxu0
        %s1127 = scalar_lea.vmem %s394, 4 [#allocation11]
        %v1128 = vld [vmem:[%s1127] sm:$0x3]
        %vm1129 = vnez %v1128
        %v1130 = vsel %vm1129, 16843009, 0
        %v1131 = vunpack.c.0.s8 %v1130
        %vm1132 = vcmp.ne.s32.totalorder %v1131, 0
        %v1133 = vsel %vm1132, -inf, %v1124
        %v1134 = vsel %vm692, %v1133, -inf
        %1135 = vmax.xlane.f32.xlu0 %v1134
        %v1136 = vpop.xlane.xlu0 %1135
        %v1137 = vsub.f32 %v1133, %v1136
        %v1138 = vmul.f32 %v1137, 1.442695
        %v1139 = vpow.pop %v1138
        %v1140 = vsel %vm692, %v1139, 0.0
        %1141 = vadd.xlane.f32.xlu0 %v1140
        %v1142 = vpop.xlane.xlu0 %1141
        %v1143 = vrcp.pop %v1142
        %v1144 = vmul.f32 %v1139, %v1143
        %1146 = vrot.lane.b32.xlu0 %v1046, 112
        %v1147 = vpop.permute.xlu0 %1146
        %v1150 = vsel %vm692, %v1144, 0
        %1152 = vmatprep.subr.mxu0 0.0
        %1153 = vmatpush1.msra.mxu0 %v1147
        %1154 = vmatprep.subr.mxu0 0.0
        %1155 = vmatpush1.msra.mxu0 0.0
        %1156 = vmatprep.subr.mxu0 0.0
        %1157 = vmatpush1.msra.mxu0 0.0
        %1158 = vmatprep.subr.mxu0 0.0
        %1159 = vmatpush1.msra.mxu0 0.0
        %1160 = vmatprep.subr.mxu0 0.0
        %1161 = vmatpush1.msra.mxu0 0.0
        %1162 = vmatprep.subr.mxu0 0.0
        %1163 = vmatpush1.msra.mxu0 0.0
        %1164 = vmatprep.subr.mxu0 0.0
        %1165 = vmatpush1.msra.mxu0 0.0
        %1166 = vmatprep.subr.mxu0 0.0
        %1167 = vmatpush1.msra.mxu0 0.0
        %1168 = vmatprep.subr.mxu0 0.0
        %1169 = vmatpush1.msra.mxu0 0.0
        %1170 = vmatprep.subr.mxu0 0.0
        %1171 = vmatpush1.msra.mxu0 0.0
        %1172 = vmatprep.subr.mxu0 0.0
        %1173 = vmatpush1.msra.mxu0 0.0
        %1174 = vmatprep.subr.mxu0 0.0
        %1175 = vmatpush1.msra.mxu0 0.0
        %1176 = vmatprep.subr.mxu0 0.0
        %1177 = vmatpush1.msra.mxu0 0.0
        %1178 = vmatprep.subr.mxu0 0.0
        %1179 = vmatpush1.msra.mxu0 0.0
        %1180 = vmatprep.subr.mxu0 0.0
        %1181 = vmatpush1.msra.mxu0 0.0
        %1182 = vmatprep.subr.mxu0 0.0
        %1183 = vmatpush1.msra.mxu0 0.0
        %1184 = vmatprep.subr.mxu0 0.0
        %1185 = vmatpush1.msra.mxu0 0.0
        %1186 = vmatprep.subr.mxu0 0.0
        %1187 = vmatpush1.msra.mxu0 0.0
        %1188 = vmatprep.subr.mxu0 0.0
        %1189 = vmatpush1.msra.mxu0 0.0
        %1190 = vmatprep.subr.mxu0 0.0
        %1191 = vmatpush1.msra.mxu0 0.0
        %1192 = vmatprep.subr.mxu0 0.0
        %1193 = vmatpush1.msra.mxu0 0.0
        %1194 = vmatprep.subr.mxu0 0.0
        %1195 = vmatpush1.msra.mxu0 0.0
        %1196 = vmatprep.subr.mxu0 0.0
        %1197 = vmatpush1.msra.mxu0 0.0
        %1198 = vmatprep.subr.mxu0 0.0
        %1199 = vmatpush1.msra.mxu0 0.0
        %1200 = vmatprep.subr.mxu0 0.0
        %1201 = vmatpush1.msra.mxu0 0.0
        %1202 = vmatprep.subr.mxu0 0.0
        %1203 = vmatpush1.msra.mxu0 0.0
        %1204 = vmatprep.subr.mxu0 0.0
        %1205 = vmatpush1.msra.mxu0 0.0
        %1206 = vmatprep.subr.mxu0 0.0
        %1207 = vmatpush1.msra.mxu0 0.0
        %1208 = vmatprep.subr.mxu0 0.0
        %1209 = vmatpush1.msra.mxu0 0.0
        %1210 = vmatprep.subr.mxu0 0.0
        %1211 = vmatpush1.msra.mxu0 0.0
        %1212 = vmatprep.subr.mxu0 0.0
        %1213 = vmatpush1.msra.mxu0 0.0
        %1214 = vmatprep.subr.mxu0 0.0
        %1215 = vmatpush1.msra.mxu0 0.0
        %1216 = vmatprep.mubr.f32.mxu0 0.0
        %1217 = vmatmul.mubr.f32.gmra.mrb[0].mxu0 %v1150
        %v1218 = vpop.f32.mrb[0].mxu0
        %v1219 = vadd.f32 0.0, %v1218
        %v1220 = vpop.f32.mrb[0].mxu0
        %1221 = vdwg.mxu0
        %1223 = vrot.lane.b32.xlu0 %v1219, 16
        %v1224 = vpop.permute.xlu0 %1223
        %vm1226 = vcmask 195712
        %1227 = vst.msk [vmem:[#allocation5] sm:$0xff] %vm1226, %v1224
        %v1228 = vld [vmem:[#allocation2] sm:$0xff]
        %v1229 = vld [vmem:[#allocation3] sm:$0xff]
        %v1230 = vld [vmem:[#allocation4] sm:$0xff]
        %1232 = vrot.lane.b32.xlu0 %v1228, 104
        %v1233 = vpop.permute.xlu0 %1232
        %1235 = vrot.lane.b32.xlu0 %v1229, 104
        %v1236 = vpop.permute.xlu0 %1235
        %v1237 = vsel %vm692, %v1233, 0
        %v1239 = vsel %vm692, %v1236, 0
        %1241 = vmatprep.subr.mxu0 0.0
        %1242 = vmatpush1.xpose.msra.mxu0 %v1239
        %1243 = vmatprep.subr.mxu0 0.0
        %1244 = vmatpush1.xpose.msra.mxu0 0.0
        %1245 = vmatprep.subr.mxu0 0.0
        %1246 = vmatpush1.xpose.msra.mxu0 0.0
        %1247 = vmatprep.subr.mxu0 0.0
        %1248 = vmatpush1.xpose.msra.mxu0 0.0
        %1249 = vmatprep.subr.mxu0 0.0
        %1250 = vmatpush1.xpose.msra.mxu0 0.0
        %1251 = vmatprep.subr.mxu0 0.0
        %1252 = vmatpush1.xpose.msra.mxu0 0.0
        %1253 = vmatprep.subr.mxu0 0.0
        %1254 = vmatpush1.xpose.msra.mxu0 0.0
        %1255 = vmatprep.subr.mxu0 0.0
        %1256 = vmatpush1.xpose.msra.mxu0 0.0
        %1257 = vmatprep.subr.mxu0 0.0
        %1258 = vmatpush1.xpose.msra.mxu0 0.0
        %1259 = vmatprep.subr.mxu0 0.0
        %1260 = vmatpush1.xpose.msra.mxu0 0.0
        %1261 = vmatprep.subr.mxu0 0.0
        %1262 = vmatpush1.xpose.msra.mxu0 0.0
        %1263 = vmatprep.subr.mxu0 0.0
        %1264 = vmatpush1.xpose.msra.mxu0 0.0
        %1265 = vmatprep.subr.mxu0 0.0
        %1266 = vmatpush1.xpose.msra.mxu0 0.0
        %1267 = vmatprep.subr.mxu0 0.0
        %1268 = vmatpush1.xpose.msra.mxu0 0.0
        %1269 = vmatprep.subr.mxu0 0.0
        %1270 = vmatpush1.xpose.msra.mxu0 0.0
        %1271 = vmatprep.subr.mxu0 0.0
        %1272 = vmatpush1.xpose.msra.mxu0 0.0
        %1273 = vmatprep.subr.mxu0 0.0
        %1274 = vmatpush1.xpose.msra.mxu0 0.0
        %1275 = vmatprep.subr.mxu0 0.0
        %1276 = vmatpush1.xpose.msra.mxu0 0.0
        %1277 = vmatprep.subr.mxu0 0.0
        %1278 = vmatpush1.xpose.msra.mxu0 0.0
        %1279 = vmatprep.subr.mxu0 0.0
        %1280 = vmatpush1.xpose.msra.mxu0 0.0
        %1281 = vmatprep.subr.mxu0 0.0
        %1282 = vmatpush1.xpose.msra.mxu0 0.0
        %1283 = vmatprep.subr.mxu0 0.0
        %1284 = vmatpush1.xpose.msra.mxu0 0.0
        %1285 = vmatprep.subr.mxu0 0.0
        %1286 = vmatpush1.xpose.msra.mxu0 0.0
        %1287 = vmatprep.subr.mxu0 0.0
        %1288 = vmatpush1.xpose.msra.mxu0 0.0
        %1289 = vmatprep.subr.mxu0 0.0
        %1290 = vmatpush1.xpose.msra.mxu0 0.0
        %1291 = vmatprep.subr.mxu0 0.0
        %1292 = vmatpush1.xpose.msra.mxu0 0.0
        %1293 = vmatprep.subr.mxu0 0.0
        %1294 = vmatpush1.xpose.msra.mxu0 0.0
        %1295 = vmatprep.subr.mxu0 0.0
        %1296 = vmatpush1.xpose.msra.mxu0 0.0
        %1297 = vmatprep.subr.mxu0 0.0
        %1298 = vmatpush1.xpose.msra.mxu0 0.0
        %1299 = vmatprep.subr.mxu0 0.0
        %1300 = vmatpush1.xpose.msra.mxu0 0.0
        %1301 = vmatprep.subr.mxu0 0.0
        %1302 = vmatpush1.xpose.msra.mxu0 0.0
        %1303 = vmatprep.subr.mxu0 0.0
        %1304 = vmatpush1.xpose.msra.mxu0 0.0
        %1305 = vmatprep.mubr.f32.mxu0 0.0
        %1306 = vmatmul.mubr.f32.gmra.mrb[0].mxu0 %v1237
        %v1307 = vpop.f32.mrb[0].mxu0
        %v1308 = vadd.f32 0.0, %v1307
        %v1309 = vpop.f32.mrb[0].mxu0
        %1310 = vdwg.mxu0
        %s1311 = scalar_lea.vmem %s394, 6 [#allocation11]
        %v1312 = vld [vmem:[%s1311] sm:$0x3]
        %vm1313 = vnez %v1312
        %v1314 = vsel %vm1313, 16843009, 0
        %v1315 = vunpack.c.0.s8 %v1314
        %vm1316 = vcmp.ne.s32.totalorder %v1315, 0
        %v1317 = vsel %vm1316, -inf, %v1308
        %v1318 = vsel %vm692, %v1317, -inf
        %1319 = vmax.xlane.f32.xlu0 %v1318
        %v1320 = vpop.xlane.xlu0 %1319
        %v1321 = vsub.f32 %v1317, %v1320
        %v1322 = vmul.f32 %v1321, 1.442695
        %v1323 = vpow.pop %v1322
        %v1324 = vsel %vm692, %v1323, 0.0
        %1325 = vadd.xlane.f32.xlu0 %v1324
        %v1326 = vpop.xlane.xlu0 %1325
        %v1327 = vrcp.pop %v1326
        %v1328 = vmul.f32 %v1323, %v1327
        %1330 = vrot.lane.b32.xlu0 %v1230, 104
        %v1331 = vpop.permute.xlu0 %1330
        %v1334 = vsel %vm692, %v1328, 0
        %1336 = vmatprep.subr.mxu0 0.0
        %1337 = vmatpush1.msra.mxu0 %v1331
        %1338 = vmatprep.subr.mxu0 0.0
        %1339 = vmatpush1.msra.mxu0 0.0
        %1340 = vmatprep.subr.mxu0 0.0
        %1341 = vmatpush1.msra.mxu0 0.0
        %1342 = vmatprep.subr.mxu0 0.0
        %1343 = vmatpush1.msra.mxu0 0.0
        %1344 = vmatprep.subr.mxu0 0.0
        %1345 = vmatpush1.msra.mxu0 0.0
        %1346 = vmatprep.subr.mxu0 0.0
        %1347 = vmatpush1.msra.mxu0 0.0
        %1348 = vmatprep.subr.mxu0 0.0
        %1349 = vmatpush1.msra.mxu0 0.0
        %1350 = vmatprep.subr.mxu0 0.0
        %1351 = vmatpush1.msra.mxu0 0.0
        %1352 = vmatprep.subr.mxu0 0.0
        %1353 = vmatpush1.msra.mxu0 0.0
        %1354 = vmatprep.subr.mxu0 0.0
        %1355 = vmatpush1.msra.mxu0 0.0
        %1356 = vmatprep.subr.mxu0 0.0
        %1357 = vmatpush1.msra.mxu0 0.0
        %1358 = vmatprep.subr.mxu0 0.0
        %1359 = vmatpush1.msra.mxu0 0.0
        %1360 = vmatprep.subr.mxu0 0.0
        %1361 = vmatpush1.msra.mxu0 0.0
        %1362 = vmatprep.subr.mxu0 0.0
        %1363 = vmatpush1.msra.mxu0 0.0
        %1364 = vmatprep.subr.mxu0 0.0
        %1365 = vmatpush1.msra.mxu0 0.0
        %1366 = vmatprep.subr.mxu0 0.0
        %1367 = vmatpush1.msra.mxu0 0.0
        %1368 = vmatprep.subr.mxu0 0.0
        %1369 = vmatpush1.msra.mxu0 0.0
        %1370 = vmatprep.subr.mxu0 0.0
        %1371 = vmatpush1.msra.mxu0 0.0
        %1372 = vmatprep.subr.mxu0 0.0
        %1373 = vmatpush1.msra.mxu0 0.0
        %1374 = vmatprep.subr.mxu0 0.0
        %1375 = vmatpush1.msra.mxu0 0.0
        %1376 = vmatprep.subr.mxu0 0.0
        %1377 = vmatpush1.msra.mxu0 0.0
        %1378 = vmatprep.subr.mxu0 0.0
        %1379 = vmatpush1.msra.mxu0 0.0
        %1380 = vmatprep.subr.mxu0 0.0
        %1381 = vmatpush1.msra.mxu0 0.0
        %1382 = vmatprep.subr.mxu0 0.0
        %1383 = vmatpush1.msra.mxu0 0.0
        %1384 = vmatprep.subr.mxu0 0.0
        %1385 = vmatpush1.msra.mxu0 0.0
        %1386 = vmatprep.subr.mxu0 0.0
        %1387 = vmatpush1.msra.mxu0 0.0
        %1388 = vmatprep.subr.mxu0 0.0
        %1389 = vmatpush1.msra.mxu0 0.0
        %1390 = vmatprep.subr.mxu0 0.0
        %1391 = vmatpush1.msra.mxu0 0.0
        %1392 = vmatprep.subr.mxu0 0.0
        %1393 = vmatpush1.msra.mxu0 0.0
        %1394 = vmatprep.subr.mxu0 0.0
        %1395 = vmatpush1.msra.mxu0 0.0
        %1396 = vmatprep.subr.mxu0 0.0
        %1397 = vmatpush1.msra.mxu0 0.0
        %1398 = vmatprep.subr.mxu0 0.0
        %1399 = vmatpush1.msra.mxu0 0.0
        %1400 = vmatprep.mubr.f32.mxu0 0.0
        %1401 = vmatmul.mubr.f32.gmra.mrb[0].mxu0 %v1334
        %v1402 = vpop.f32.mrb[0].mxu0
        %v1403 = vadd.f32 0.0, %v1402
        %v1404 = vpop.f32.mrb[0].mxu0
        %1405 = vdwg.mxu0
        %1407 = vrot.lane.b32.xlu0 %v1403, 24
        %v1408 = vpop.permute.xlu0 %1407
        %vm1410 = vcmask 261312
        %1411 = vst.msk [vmem:[#allocation5] sm:$0xff] %vm1410, %v1408
        %v1412 = vld [vmem:[#allocation5] sm:$0xff]
        %v1413 = vld [vmem:[#allocation17] sm:$0xff]
        %v1414 = vld [vmem:[#allocation17 + $0x8] sm:$0xff]
        %v1415 = vld [vmem:[#allocation17 + $0x10] sm:$0xff]
        %v1416 = vld [vmem:[#allocation17 + $0x18] sm:$0xff]
        %v1417 = vld [vmem:[%s7] sm:$0x1]
        %v1419 = vlaneseq
        %v1420 = vshrl.u32 %v1419, 7
        %v1421 = vsub.s32 0, %v1420
        %v1422 = vrot.slane %v1417, %v1421
        %v1425 = vsel %vm461, %v1412, 0
        %1427 = vmatprep.subr.mxu0 0.0
        %1428 = vmatpush1.msra.mxu0 %v1413
        %1429 = vmatprep.subr.mxu0 0.0
        %1430 = vmatpush1.msra.mxu0 %v1414
        %1431 = vmatprep.subr.mxu0 0.0
        %1432 = vmatpush1.msra.mxu0 %v1415
        %1433 = vmatprep.subr.mxu0 0.0
        %1434 = vmatpush1.msra.mxu0 %v1416
        %1435 = vmatprep.subr.mxu0 0.0
        %1436 = vmatpush1.msra.mxu0 0.0
        %1437 = vmatprep.subr.mxu0 0.0
        %1438 = vmatpush1.msra.mxu0 0.0
        %1439 = vmatprep.subr.mxu0 0.0
        %1440 = vmatpush1.msra.mxu0 0.0
        %1441 = vmatprep.subr.mxu0 0.0
        %1442 = vmatpush1.msra.mxu0 0.0
        %1443 = vmatprep.subr.mxu0 0.0
        %1444 = vmatpush1.msra.mxu0 0.0
        %1445 = vmatprep.subr.mxu0 0.0
        %1446 = vmatpush1.msra.mxu0 0.0
        %1447 = vmatprep.subr.mxu0 0.0
        %1448 = vmatpush1.msra.mxu0 0.0
        %1449 = vmatprep.subr.mxu0 0.0
        %1450 = vmatpush1.msra.mxu0 0.0
        %1451 = vmatprep.subr.mxu0 0.0
        %1452 = vmatpush1.msra.mxu0 0.0
        %1453 = vmatprep.subr.mxu0 0.0
        %1454 = vmatpush1.msra.mxu0 0.0
        %1455 = vmatprep.subr.mxu0 0.0
        %1456 = vmatpush1.msra.mxu0 0.0
        %1457 = vmatprep.subr.mxu0 0.0
        %1458 = vmatpush1.msra.mxu0 0.0
        %1459 = vmatprep.subr.mxu0 0.0
        %1460 = vmatpush1.msra.mxu0 0.0
        %1461 = vmatprep.subr.mxu0 0.0
        %1462 = vmatpush1.msra.mxu0 0.0
        %1463 = vmatprep.subr.mxu0 0.0
        %1464 = vmatpush1.msra.mxu0 0.0
        %1465 = vmatprep.subr.mxu0 0.0
        %1466 = vmatpush1.msra.mxu0 0.0
        %1467 = vmatprep.subr.mxu0 0.0
        %1468 = vmatpush1.msra.mxu0 0.0
        %1469 = vmatprep.subr.mxu0 0.0
        %1470 = vmatpush1.msra.mxu0 0.0
        %1471 = vmatprep.subr.mxu0 0.0
        %1472 = vmatpush1.msra.mxu0 0.0
        %1473 = vmatprep.subr.mxu0 0.0
        %1474 = vmatpush1.msra.mxu0 0.0
        %1475 = vmatprep.subr.mxu0 0.0
        %1476 = vmatpush1.msra.mxu0 0.0
        %1477 = vmatprep.subr.mxu0 0.0
        %1478 = vmatpush1.msra.mxu0 0.0
        %1479 = vmatprep.subr.mxu0 0.0
        %1480 = vmatpush1.msra.mxu0 0.0
        %1481 = vmatprep.subr.mxu0 0.0
        %1482 = vmatpush1.msra.mxu0 0.0
        %1483 = vmatprep.subr.mxu0 0.0
        %1484 = vmatpush1.msra.mxu0 0.0
        %1485 = vmatprep.subr.mxu0 0.0
        %1486 = vmatpush1.msra.mxu0 0.0
        %1487 = vmatprep.subr.mxu0 0.0
        %1488 = vmatpush1.msra.mxu0 0.0
        %1489 = vmatprep.subr.mxu0 0.0
        %1490 = vmatpush1.msra.mxu0 0.0
        %1491 = vmatprep.mubr.f32.mxu0 0.0
        %1492 = vmatmul.mubr.f32.gmra.mrb[0].mxu0 %v1425
        %v1493 = vpop.f32.mrb[0].mxu0
        %v1494 = vadd.f32 %v1422, %v1493
        %v1495 = vpop.f32.mrb[0].mxu0
        %1496 = vdwg.mxu0
        %1497 = vst.msk [vmem:[%s452] sm:$0xff] %vm461, %v1494
        %s1498 = sand.u32 %s221, 1
        %s1499 = scalar_lea.sflag [#allocation8], %s1498
        %s1500 = sand.u32 %s221, 1
        %s1501 = smul.addr %s1500, 8
        %s1502 = scalar_lea.vmem [#allocation18], %s1501
        // Predicated region
        $region81: #{tpu_custom_call.1} parent=51 // pred_check
          %p1503 = pneg %p231
        $region82: #{tpu_custom_call.1} parent=51 // pred_check_branch
          %1505 = sbr.rel (%p1503) target = $region84
        $region83: #{tpu_custom_call.1} parent=51 // pred_region
          %s1507 = ssub.s32 128, 128
          %1508 = vsyncadd %s1499, %s1507
          %s1509 = smul.addr %s30, 128
          %s1510 = scalar_lea.hbm %s8, %s1509
          %s1512 = sshll.u32 %s1502, 4
          %s1513 = int_to_ptr.vmem [resolvable:$true] %s1512
          %1515 = dma.vmem_to_hbm [thread:$0]  %s1513, 128, %s1510, %s1499
        $region84: #{tpu_custom_call.1} parent=51 // pred_fallthru
          _
      $region52: #{tpu_custom_call.1} parent=5 // pred_fallthru
        _
      %p1516 = scmp.le.s32.totalorder 2, %s25
      // Predicated region
      $region85: #{tpu_custom_call.1} parent=5 // pred_check
        %p1517 = pneg %p1516
      $region86: #{tpu_custom_call.1} parent=5 // pred_check_branch
        %1519 = sbr.rel (%p1517) target = $region88
      $region87: #{tpu_custom_call.1} parent=5 // pred_region
        %s1520 = ssub.s32 %s25, 2
        // Predicated region
        $region89: #{tpu_custom_call.1} parent=87 // pred_check
          %p1521 = pneg %p237
        $region90: #{tpu_custom_call.1} parent=87 // pred_check_branch
          %1523 = sbr.rel (%p1521) target = $region92
        $region91: #{tpu_custom_call.1} parent=87 // pred_region
          %s1524 = sand.u32 %s222, 1
          %s1525 = scalar_lea.sflag [#allocation8], %s1524
          %s1526 = sand.u32 %s222, 1
          %s1527 = smul.addr %s1526, 8
          %s1528 = scalar_lea.vmem [#allocation18], %s1527
          %1529 = dma.done %s1525, 128
        $region92: #{tpu_custom_call.1} parent=87 // pred_fallthru
          _
      $region88: #{tpu_custom_call.1} parent=5 // pred_fallthru
        _
    $region6: #{tpu_custom_call.1} parent=1 // loop_footer
      %s29 = sadd.s32 1, %s25
    $region7: #{tpu_custom_call.1} parent=1 // loop_footer_branch
      %24 = sbr.rel target = $region3
    $region8: #{tpu_custom_call.1} parent=1 // loop_exit
      _
    %1530 = vsyncpa [#allocation7], 1
    %s1531 = scalar_lea.sflag [#allocation7], 1
    %1532 = vsyncpa %s1531, 1
    %1533 = vsyncpa [#allocation10], 1
    %s1534 = scalar_lea.sflag [#allocation10], 1
    %1535 = vsyncpa %s1534, 1
    %1536 = vsyncpa [#allocation13], 1
    %1537 = vsyncpa [#allocation16], 1
    %1538 = vsyncpa [#allocation8], 1
    %s1539 = scalar_lea.sflag [#allocation8], 1
    %1540 = vsyncpa %s1539, 1

</llo_original>
